<compile_context>
chip_gen: v5e
topology: v5e:2x2
jax: 0.10.0
libtpu: 0.0.40
codegen_flags: <defaults>
</compile_context>

<pallas_src>
import jax
import jax.numpy as jnp
from jax.experimental import pallas as pl
from jax.experimental.pallas import tpu as pltpu

H, W = 12, 12
C_IN, C_OUT = 128, 192
KH = 7
PAD = 3
EPS = 1e-3
HW = H * W                    # 144
HWP = (H + 2 * PAD) * W       # 216 H-padded rows


def bn_relu_conv_kernel(x_ref, gb_ref, w_ref, o_ref, ypad_ref):
    # x_ref:    (C_IN, H*W)         = (128, 144) f32  (NCHW slab; wrapper only reshapes)
    # gb_ref:   (C_IN, 2) f32       column 0 = gamma, column 1 = beta
    # w_ref:    (KH*C_IN, C_OUT)    = (896, 192) f32  (pre-rearranged once)
    # o_ref:    (C_OUT, H*W)        = (192, 144) f32  (already NCHW-ordered)
    # ypad_ref: ((H+2*PAD)*W, C_IN) = (216, 128) f32  scratch (H-padded activations)
    x = x_ref[...]

    # --- BatchNorm2d: training-mode batch statistics (biased variance), per channel. ---
    mean = jnp.mean(x, axis=1, keepdims=True)                    # (128, 1)
    centered = x - mean
    var = jnp.mean(centered * centered, axis=1, keepdims=True)   # (128, 1)
    inv = jax.lax.rsqrt(var + EPS)
    gamma = gb_ref[:, 0:1]
    beta = gb_ref[:, 1:2]
    y = centered * (inv * gamma) + beta
    y = jnp.maximum(y, 0.0)                                      # ReLU

    # --- Layout change (C,HW) -> (HW,C) once in-kernel (XLU transpose). ---
    yt = jnp.transpose(y)                                        # (144, 128) f32

    # --- Zero ONLY the pad rows; drop the activations into the middle. ---
    zpad = jnp.zeros((PAD * W, C_IN), jnp.float32)
    ypad_ref[: PAD * W, :] = zpad
    ypad_ref[(PAD + H) * W:, :] = zpad
    ypad_ref[PAD * W:(PAD + H) * W, :] = yt

    # --- im2col: 7 H-shifted copies concatenated along lanes -> ONE K=896 f32 matmul. ---
    # NOTE(synk): tap offsets kh*W (12, 24, ...) are not 8-row aligned; slice loads realign
    # in VMEM, acceptable at this size per review.
    lhs = jnp.concatenate(
        [ypad_ref[kh * W: kh * W + HW, :] for kh in range(KH)], axis=-1
    )                                                            # (144, 896) f32
    acc = jnp.dot(lhs, w_ref[...], preferred_element_type=jnp.float32)   # (144, 192) f32

    # Write output already as (C_out, H*W) so the wrapper only needs a free reshape to NCHW.
    o_ref[...] = jnp.transpose(acc)


def prepare_params(gamma, beta, weight):
    """One-time parameter prep, hoisted out of the per-call hot path."""
    # torch OIHW (192,128,7,1) -> (KH, C_in, C_out) -> (KH*C_in, C_out), f32.
    w_flat = (
        jnp.transpose(weight[:, :, :, 0], (2, 1, 0))
        .reshape(KH * C_IN, C_OUT)
        .astype(jnp.float32)
    )
    # Pack gamma/beta into a single (C_IN, 2) input (one DMA descriptor, one VMEM tile).
    gb = jnp.stack(
        [gamma.astype(jnp.float32), beta.astype(jnp.float32)], axis=1
    )                                                            # (128, 2)
    return gb, w_flat


@jax.jit
def bn_relu_conv(x_nchw, gb, w_flat):
    """x_nchw: (1,128,12,12) f32. Returns (1,192,12,12) f32 (matches the PyTorch module)."""
    # Pure reshape of the contiguous NCHW buffer - no transpose op in the wrapper.
    x_slab = x_nchw.reshape(C_IN, HW)                            # (128, 144)

    out_slab = pl.pallas_call(
        bn_relu_conv_kernel,
        out_shape=jax.ShapeDtypeStruct((C_OUT, HW), jnp.float32),
        in_specs=[pl.BlockSpec(memory_space=pltpu.MemorySpace.VMEM)] * 3,
        out_specs=pl.BlockSpec(memory_space=pltpu.MemorySpace.VMEM),
        scratch_shapes=[pltpu.VMEM((HWP, C_IN), jnp.float32)],
    )(x_slab, gb, w_flat)

    # Free reshape back to NCHW - no transpose op in the wrapper.
    return out_slab.reshape(1, C_OUT, H, W)


def reference(x, gamma, beta, weight):
    """Pure-JAX f32 reference matching PyTorch training-mode forward."""
    mean = jnp.mean(x, axis=(0, 2, 3), keepdims=True)
    var = jnp.mean((x - mean) ** 2, axis=(0, 2, 3), keepdims=True)
    y = (x - mean) / jnp.sqrt(var + EPS)
    y = y * gamma.reshape(1, -1, 1, 1) + beta.reshape(1, -1, 1, 1)
    y = jnp.maximum(y, 0.0)
    return jax.lax.conv_general_dilated(
        y, weight,
        window_strides=(1, 1),
        padding=((PAD, PAD), (0, 0)),
        dimension_numbers=("NCHW", "OIHW", "NCHW"),
        precision=jax.lax.Precision.HIGHEST,
    )


if __name__ == "__main__":
    key = jax.random.PRNGKey(0)
    k1, k2, k3, k4 = jax.random.split(key, 4)

    # Deterministic synthetic parameters (shapes from the module __init__).
    x = jax.random.normal(k1, (1, C_IN, H, W), jnp.float32)
    gamma = 1.0 + 0.1 * jax.random.normal(k2, (C_IN,), jnp.float32)
    beta = 0.1 * jax.random.normal(k3, (C_IN,), jnp.float32)
    weight = jax.random.normal(k4, (C_OUT, C_IN, KH, 1), jnp.float32) / jnp.sqrt(C_IN * KH)

    gb, w_flat = prepare_params(gamma, beta, weight)

    out = jax.block_until_ready(bn_relu_conv(x, gb, w_flat))
    assert out.shape == (1, C_OUT, H, W), out.shape

    # f32 MXU matmul (multi-pass) vs f32 HIGHEST-precision reference: tolerance 1e-2 covers
    # the K_eff=896 accumulation on all generations.
    ref = reference(x, gamma, beta, weight)
    max_err = float(jnp.max(jnp.abs(out - ref)))
    assert max_err < 1e-2, f"max abs error {max_err}"

    print("KERNEL_OK")
</pallas_src>

<mosaic_0001>
module attributes {stable_mosaic.version = 11 : i64} {
  func.func @bn_relu_conv_kernel(%arg0: memref<128x144xf32, #tpu.memory_space<vmem>>, %arg1: memref<128x2xf32, #tpu.memory_space<vmem>>, %arg2: memref<896x192xf32, #tpu.memory_space<vmem>>, %arg3: memref<192x144xf32, #tpu.memory_space<vmem>>, %arg4: memref<216x128xf32, #tpu.memory_space<vmem>>) attributes {dimension_semantics = [], scalar_prefetch = 0 : i64, scratch_operands = 1 : i64, tpu.core_type = #tpu.core_type<tc>} {
    %c0 = arith.constant 0 : index
    %c0_0 = arith.constant 0 : index
    %0 = vector.load %arg0[%c0, %c0_0] : memref<128x144xf32, #tpu.memory_space<vmem>>, vector<128x144xf32>
    %cst = arith.constant dense<0.000000e+00> : vector<128xf32>
    %1 = vector.multi_reduction <add>, %0, %cst [1] : vector<128x144xf32> to vector<128xf32>
    %2 = vector.shape_cast %1 : vector<128xf32> to vector<128x1xf32>
    %cst_1 = arith.constant 1.440000e+02 : f32
    %3 = vector.broadcast %cst_1 : f32 to vector<128x1xf32>
    %4 = arith.divf %2, %3 : vector<128x1xf32>
    %5 = vector.broadcast %4 : vector<128x1xf32> to vector<128x144xf32>
    %6 = arith.subf %0, %5 : vector<128x144xf32>
    %7 = arith.mulf %6, %6 : vector<128x144xf32>
    %cst_2 = arith.constant dense<0.000000e+00> : vector<128xf32>
    %8 = vector.multi_reduction <add>, %7, %cst_2 [1] : vector<128x144xf32> to vector<128xf32>
    %9 = vector.shape_cast %8 : vector<128xf32> to vector<128x1xf32>
    %cst_3 = arith.constant 1.440000e+02 : f32
    %10 = vector.broadcast %cst_3 : f32 to vector<128x1xf32>
    %11 = arith.divf %9, %10 : vector<128x1xf32>
    %cst_4 = arith.constant 1.000000e-03 : f32
    %12 = vector.broadcast %cst_4 : f32 to vector<128x1xf32>
    %13 = arith.addf %11, %12 : vector<128x1xf32>
    %14 = math.rsqrt %13 : vector<128x1xf32>
    %c0_5 = arith.constant 0 : index
    %c0_6 = arith.constant 0 : index
    %15 = vector.load %arg1[%c0_5, %c0_6] : memref<128x2xf32, #tpu.memory_space<vmem>>, vector<128x1xf32>
    %c0_7 = arith.constant 0 : index
    %c1 = arith.constant 1 : index
    %16 = vector.load %arg1[%c0_7, %c1] : memref<128x2xf32, #tpu.memory_space<vmem>>, vector<128x1xf32>
    %17 = arith.mulf %14, %15 : vector<128x1xf32>
    %18 = vector.broadcast %17 : vector<128x1xf32> to vector<128x144xf32>
    %19 = arith.mulf %6, %18 : vector<128x144xf32>
    %20 = vector.broadcast %16 : vector<128x1xf32> to vector<128x144xf32>
    %21 = arith.addf %19, %20 : vector<128x144xf32>
    %cst_8 = arith.constant 0.000000e+00 : f32
    %22 = vector.broadcast %cst_8 : f32 to vector<128x144xf32>
    %23 = arith.maximumf %21, %22 : vector<128x144xf32>
    %24 = tpu.transpose %23, [1, 0] : vector<128x144xf32> -> vector<144x128xf32>
    %cst_9 = arith.constant 0.000000e+00 : f32
    %25 = vector.broadcast %cst_9 : f32 to vector<36x128xf32>
    %c0_10 = arith.constant 0 : index
    %c0_11 = arith.constant 0 : index
    %26 = vector.load %arg4[%c0_10, %c0_11] : memref<216x128xf32, #tpu.memory_space<vmem>>, vector<36x128xf32>
    tpu.vector_store %arg4[%c0_10, %c0_11], %25 {strides = array<i32>} : memref<216x128xf32, #tpu.memory_space<vmem>>, vector<36x128xf32>,
    %c180 = arith.constant 180 : index
    %c0_12 = arith.constant 0 : index
    %27 = vector.load %arg4[%c180, %c0_12] : memref<216x128xf32, #tpu.memory_space<vmem>>, vector<36x128xf32>
    tpu.vector_store %arg4[%c180, %c0_12], %25 {strides = array<i32>} : memref<216x128xf32, #tpu.memory_space<vmem>>, vector<36x128xf32>,
    %c36 = arith.constant 36 : index
    %c0_13 = arith.constant 0 : index
    %28 = vector.load %arg4[%c36, %c0_13] : memref<216x128xf32, #tpu.memory_space<vmem>>, vector<144x128xf32>
    tpu.vector_store %arg4[%c36, %c0_13], %24 {strides = array<i32>} : memref<216x128xf32, #tpu.memory_space<vmem>>, vector<144x128xf32>,
    %c0_14 = arith.constant 0 : index
    %c0_15 = arith.constant 0 : index
    %29 = vector.load %arg4[%c0_14, %c0_15] : memref<216x128xf32, #tpu.memory_space<vmem>>, vector<144x128xf32>
    %c12 = arith.constant 12 : index
    %c0_16 = arith.constant 0 : index
    %30 = vector.load %arg4[%c12, %c0_16] : memref<216x128xf32, #tpu.memory_space<vmem>>, vector<144x128xf32>
    %c24 = arith.constant 24 : index
    %c0_17 = arith.constant 0 : index
    %31 = vector.load %arg4[%c24, %c0_17] : memref<216x128xf32, #tpu.memory_space<vmem>>, vector<144x128xf32>
    %c36_18 = arith.constant 36 : index
    %c0_19 = arith.constant 0 : index
    %32 = vector.load %arg4[%c36_18, %c0_19] : memref<216x128xf32, #tpu.memory_space<vmem>>, vector<144x128xf32>
    %c48 = arith.constant 48 : index
    %c0_20 = arith.constant 0 : index
    %33 = vector.load %arg4[%c48, %c0_20] : memref<216x128xf32, #tpu.memory_space<vmem>>, vector<144x128xf32>
    %c60 = arith.constant 60 : index
    %c0_21 = arith.constant 0 : index
    %34 = vector.load %arg4[%c60, %c0_21] : memref<216x128xf32, #tpu.memory_space<vmem>>, vector<144x128xf32>
    %c72 = arith.constant 72 : index
    %c0_22 = arith.constant 0 : index
    %35 = vector.load %arg4[%c72, %c0_22] : memref<216x128xf32, #tpu.memory_space<vmem>>, vector<144x128xf32>
    %36 = tpu.concatenate %29, %30, %31, %32, %33, %34, %35 in 1 : vector<144x128xf32>, vector<144x128xf32>, vector<144x128xf32>, vector<144x128xf32>, vector<144x128xf32>, vector<144x128xf32>, vector<144x128xf32> -> vector<144x896xf32>
    %c0_23 = arith.constant 0 : index
    %c0_24 = arith.constant 0 : index
    %37 = vector.load %arg2[%c0_23, %c0_24] : memref<896x192xf32, #tpu.memory_space<vmem>>, vector<896x192xf32>
    %cst_25 = arith.constant dense<0.000000e+00> : vector<144x192xf32>
    %38 = tpu.matmul %36, %37, %cst_25 {dimension_numbers = #tpu.dot_dimension_numbers<[1], [0], [0], [1], [0, 0, 1, 1], [], []>} : vector<144x896xf32>, vector<896x192xf32>, vector<144x192xf32> -> vector<144x192xf32>
    %39 = tpu.transpose %38, [1, 0] : vector<144x192xf32> -> vector<192x144xf32>
    %c0_26 = arith.constant 0 : index
    %c0_27 = arith.constant 0 : index
    %40 = vector.load %arg3[%c0_26, %c0_27] : memref<192x144xf32, #tpu.memory_space<vmem>>, vector<192x144xf32>
    tpu.vector_store %arg3[%c0_26, %c0_27], %39 {strides = array<i32>} : memref<192x144xf32, #tpu.memory_space<vmem>>, vector<192x144xf32>,
    return
  }
}

</mosaic_0001>

<llo_original>
// kernel: bn_relu_conv.1
$region0: #{bn_relu_conv.1}
  #allocation0 [shape = 'u32[]', space=smem, size = 0x4, offset = 0x4, fixed_abs, tag = 'smem constant byte address 0x4 - core index']
  #allocation1 [shape = 'u32[72,128]{1,0:T(1,128)}', space=vmem, size = 0x9000, scoped, tag = 'internal scratch']
  #allocation2 [shape = 'f32[216,128]{1,0:T(8,128)}', space=vmem, size = 0x1b000, scoped, tag = 'scratch operand']
  %s0 = inlined_call_operand.vmem [shape: f32[128,144], index: 0, kind: input, shape index: {}]
  %s1 = inlined_call_operand.vmem [shape: f32[128,2], index: 1, kind: input, shape index: {}]
  %s2 = inlined_call_operand.vmem [shape: f32[896,192], index: 2, kind: input, shape index: {}]
  %s3 = inlined_call_operand.vmem [shape: f32[192,144], index: 3, kind: output, shape index: {}]
  %s4 = sld [smem:[#allocation0]]
  $region22: #{bn_relu_conv.1} parent=0
    _
  %s6 = ssub.s32 1, %s4
  %s7 = scalar_select 0, %s6, %s4
  // Predicated region
  $region2: #{bn_relu_conv.1} parent=0 // pred_check
    _
  $region3: #{bn_relu_conv.1} parent=0 // pred_check_branch
    %9 = sbr.rel (0) target = $region5
  $region4: #{bn_relu_conv.1} parent=0 // pred_region
    _
  $region5: #{bn_relu_conv.1} parent=0 // pred_fallthru
    _
  // Predicated region
  $region6: #{bn_relu_conv.1} parent=0 // pred_check
    _
  $region7: #{bn_relu_conv.1} parent=0 // pred_check_branch
    %11 = sbr.rel (0) target = $region9
  $region8: #{bn_relu_conv.1} parent=0 // pred_region
    _
  $region9: #{bn_relu_conv.1} parent=0 // pred_fallthru
    _
  // Predicated region
  $region10: #{bn_relu_conv.1} parent=0 // pred_check
    _
  $region11: #{bn_relu_conv.1} parent=0 // pred_check_branch
    %13 = sbr.rel (0) target = $region13
  $region12: #{bn_relu_conv.1} parent=0 // pred_region
    _
  $region13: #{bn_relu_conv.1} parent=0 // pred_fallthru
    _
  %v14 = vld [vmem:[%s0] sm:$0xff]
  %v15 = vld [vmem:[%s0 + $0x8] sm:$0xff]
  %v16 = vld [vmem:[%s0 + $0x10] sm:$0xff]
  %v17 = vld [vmem:[%s0 + $0x18] sm:$0xff]
  %v18 = vld [vmem:[%s0 + $0x20] sm:$0xff]
  %v19 = vld [vmem:[%s0 + $0x28] sm:$0xff]
  %v20 = vld [vmem:[%s0 + $0x30] sm:$0xff]
  %v21 = vld [vmem:[%s0 + $0x38] sm:$0xff]
  %v22 = vld [vmem:[%s0 + $0x40] sm:$0xff]
  %v23 = vld [vmem:[%s0 + $0x48] sm:$0xff]
  %v24 = vld [vmem:[%s0 + $0x50] sm:$0xff]
  %v25 = vld [vmem:[%s0 + $0x58] sm:$0xff]
  %v26 = vld [vmem:[%s0 + $0x60] sm:$0xff]
  %v27 = vld [vmem:[%s0 + $0x68] sm:$0xff]
  %v28 = vld [vmem:[%s0 + $0x70] sm:$0xff]
  %v29 = vld [vmem:[%s0 + $0x78] sm:$0xff]
  %v30 = vld [vmem:[%s0 + $0x80] sm:$0xff]
  %v31 = vld [vmem:[%s0 + $0x88] sm:$0xff]
  %v32 = vld [vmem:[%s0 + $0x90] sm:$0xff]
  %v33 = vld [vmem:[%s0 + $0x98] sm:$0xff]
  %v34 = vld [vmem:[%s0 + $0xa0] sm:$0xff]
  %v35 = vld [vmem:[%s0 + $0xa8] sm:$0xff]
  %v36 = vld [vmem:[%s0 + $0xb0] sm:$0xff]
  %v37 = vld [vmem:[%s0 + $0xb8] sm:$0xff]
  %v38 = vld [vmem:[%s0 + $0xc0] sm:$0xff]
  %v39 = vld [vmem:[%s0 + $0xc8] sm:$0xff]
  %v40 = vld [vmem:[%s0 + $0xd0] sm:$0xff]
  %v41 = vld [vmem:[%s0 + $0xd8] sm:$0xff]
  %v42 = vld [vmem:[%s0 + $0xe0] sm:$0xff]
  %v43 = vld [vmem:[%s0 + $0xe8] sm:$0xff]
  %v44 = vld [vmem:[%s0 + $0xf0] sm:$0xff]
  %v45 = vld [vmem:[%s0 + $0xf8] sm:$0xff]
  %vm46 = vcmask 130048
  %v47 = vsel %vm46, %v15, 0.0
  %v48 = vadd.f32 %v14, %v47
  %49 = vadd.xlane.f32.xlu0 %v48
  %v50 = vpop.xlane.xlu0 %49
  %v51 = vsel %vm46, %v17, 0.0
  %v52 = vadd.f32 %v16, %v51
  %53 = vadd.xlane.f32.xlu0 %v52
  %v54 = vpop.xlane.xlu0 %53
  %v55 = vsel %vm46, %v19, 0.0
  %v56 = vadd.f32 %v18, %v55
  %57 = vadd.xlane.f32.xlu0 %v56
  %v58 = vpop.xlane.xlu0 %57
  %v59 = vsel %vm46, %v21, 0.0
  %v60 = vadd.f32 %v20, %v59
  %61 = vadd.xlane.f32.xlu0 %v60
  %v62 = vpop.xlane.xlu0 %61
  %v63 = vsel %vm46, %v23, 0.0
  %v64 = vadd.f32 %v22, %v63
  %65 = vadd.xlane.f32.xlu0 %v64
  %v66 = vpop.xlane.xlu0 %65
  %v67 = vsel %vm46, %v25, 0.0
  %v68 = vadd.f32 %v24, %v67
  %69 = vadd.xlane.f32.xlu0 %v68
  %v70 = vpop.xlane.xlu0 %69
  %v71 = vsel %vm46, %v27, 0.0
  %v72 = vadd.f32 %v26, %v71
  %73 = vadd.xlane.f32.xlu0 %v72
  %v74 = vpop.xlane.xlu0 %73
  %v75 = vsel %vm46, %v29, 0.0
  %v76 = vadd.f32 %v28, %v75
  %77 = vadd.xlane.f32.xlu0 %v76
  %v78 = vpop.xlane.xlu0 %77
  %v79 = vsel %vm46, %v31, 0.0
  %v80 = vadd.f32 %v30, %v79
  %81 = vadd.xlane.f32.xlu0 %v80
  %v82 = vpop.xlane.xlu0 %81
  %v83 = vsel %vm46, %v33, 0.0
  %v84 = vadd.f32 %v32, %v83
  %85 = vadd.xlane.f32.xlu0 %v84
  %v86 = vpop.xlane.xlu0 %85
  %v87 = vsel %vm46, %v35, 0.0
  %v88 = vadd.f32 %v34, %v87
  %89 = vadd.xlane.f32.xlu0 %v88
  %v90 = vpop.xlane.xlu0 %89
  %v91 = vsel %vm46, %v37, 0.0
  %v92 = vadd.f32 %v36, %v91
  %93 = vadd.xlane.f32.xlu0 %v92
  %v94 = vpop.xlane.xlu0 %93
  %v95 = vsel %vm46, %v39, 0.0
  %v96 = vadd.f32 %v38, %v95
  %97 = vadd.xlane.f32.xlu0 %v96
  %v98 = vpop.xlane.xlu0 %97
  %v99 = vsel %vm46, %v41, 0.0
  %v100 = vadd.f32 %v40, %v99
  %101 = vadd.xlane.f32.xlu0 %v100
  %v102 = vpop.xlane.xlu0 %101
  %v103 = vsel %vm46, %v43, 0.0
  %v104 = vadd.f32 %v42, %v103
  %105 = vadd.xlane.f32.xlu0 %v104
  %v106 = vpop.xlane.xlu0 %105
  %v107 = vsel %vm46, %v45, 0.0
  %v108 = vadd.f32 %v44, %v107
  %109 = vadd.xlane.f32.xlu0 %v108
  %v110 = vpop.xlane.xlu0 %109
  %v111 = vrcp.pop 144.0
  %v112 = vmul.f32 144.0, %v111
  %v113 = vsub.f32 1.0, %v112
  %v114 = vmul.f32 %v111, %v113
  %v115 = vadd.f32 %v111, %v114
  %vm116 = vweird.f32 %v111
  %v117 = vsel %vm116, %v111, %v115
  %v118 = vmul.f32 %v50, %v117
  %v119 = vmul.f32 %v54, %v117
  %v120 = vmul.f32 %v58, %v117
  %v121 = vmul.f32 %v62, %v117
  %v122 = vmul.f32 %v66, %v117
  %v123 = vmul.f32 %v70, %v117
  %v124 = vmul.f32 %v74, %v117
  %v125 = vmul.f32 %v78, %v117
  %v126 = vmul.f32 %v82, %v117
  %v127 = vmul.f32 %v86, %v117
  %v128 = vmul.f32 %v90, %v117
  %v129 = vmul.f32 %v94, %v117
  %v130 = vmul.f32 %v98, %v117
  %v131 = vmul.f32 %v102, %v117
  %v132 = vmul.f32 %v106, %v117
  %v133 = vmul.f32 %v110, %v117
  %v134 = vsub.f32 %v14, %v118
  %v135 = vsub.f32 %v15, %v118
  %v136 = vsub.f32 %v16, %v119
  %v137 = vsub.f32 %v17, %v119
  %v138 = vsub.f32 %v18, %v120
  %v139 = vsub.f32 %v19, %v120
  %v140 = vsub.f32 %v20, %v121
  %v141 = vsub.f32 %v21, %v121
  %v142 = vsub.f32 %v22, %v122
  %v143 = vsub.f32 %v23, %v122
  %v144 = vsub.f32 %v24, %v123
  %v145 = vsub.f32 %v25, %v123
  %v146 = vsub.f32 %v26, %v124
  %v147 = vsub.f32 %v27, %v124
  %v148 = vsub.f32 %v28, %v125
  %v149 = vsub.f32 %v29, %v125
  %v150 = vsub.f32 %v30, %v126
  %v151 = vsub.f32 %v31, %v126
  %v152 = vsub.f32 %v32, %v127
  %v153 = vsub.f32 %v33, %v127
  %v154 = vsub.f32 %v34, %v128
  %v155 = vsub.f32 %v35, %v128
  %v156 = vsub.f32 %v36, %v129
  %v157 = vsub.f32 %v37, %v129
  %v158 = vsub.f32 %v38, %v130
  %v159 = vsub.f32 %v39, %v130
  %v160 = vsub.f32 %v40, %v131
  %v161 = vsub.f32 %v41, %v131
  %v162 = vsub.f32 %v42, %v132
  %v163 = vsub.f32 %v43, %v132
  %v164 = vsub.f32 %v44, %v133
  %v165 = vsub.f32 %v45, %v133
  %v166 = vmul.f32 %v134, %v134
  %v167 = vmul.f32 %v135, %v135
  %v168 = vmul.f32 %v136, %v136
  %v169 = vmul.f32 %v137, %v137
  %v170 = vmul.f32 %v138, %v138
  %v171 = vmul.f32 %v139, %v139
  %v172 = vmul.f32 %v140, %v140
  %v173 = vmul.f32 %v141, %v141
  %v174 = vmul.f32 %v142, %v142
  %v175 = vmul.f32 %v143, %v143
  %v176 = vmul.f32 %v144, %v144
  %v177 = vmul.f32 %v145, %v145
  %v178 = vmul.f32 %v146, %v146
  %v179 = vmul.f32 %v147, %v147
  %v180 = vmul.f32 %v148, %v148
  %v181 = vmul.f32 %v149, %v149
  %v182 = vmul.f32 %v150, %v150
  %v183 = vmul.f32 %v151, %v151
  %v184 = vmul.f32 %v152, %v152
  %v185 = vmul.f32 %v153, %v153
  %v186 = vmul.f32 %v154, %v154
  %v187 = vmul.f32 %v155, %v155
  %v188 = vmul.f32 %v156, %v156
  %v189 = vmul.f32 %v157, %v157
  %v190 = vmul.f32 %v158, %v158
  %v191 = vmul.f32 %v159, %v159
  %v192 = vmul.f32 %v160, %v160
  %v193 = vmul.f32 %v161, %v161
  %v194 = vmul.f32 %v162, %v162
  %v195 = vmul.f32 %v163, %v163
  %v196 = vmul.f32 %v164, %v164
  %v197 = vmul.f32 %v165, %v165
  %v198 = vsel %vm46, %v167, 0.0
  %v199 = vadd.f32 %v166, %v198
  %200 = vadd.xlane.f32.xlu0 %v199
  %v201 = vpop.xlane.xlu0 %200
  %v202 = vsel %vm46, %v169, 0.0
  %v203 = vadd.f32 %v168, %v202
  %204 = vadd.xlane.f32.xlu0 %v203
  %v205 = vpop.xlane.xlu0 %204
  %v206 = vsel %vm46, %v171, 0.0
  %v207 = vadd.f32 %v170, %v206
  %208 = vadd.xlane.f32.xlu0 %v207
  %v209 = vpop.xlane.xlu0 %208
  %v210 = vsel %vm46, %v173, 0.0
  %v211 = vadd.f32 %v172, %v210
  %212 = vadd.xlane.f32.xlu0 %v211
  %v213 = vpop.xlane.xlu0 %212
  %v214 = vsel %vm46, %v175, 0.0
  %v215 = vadd.f32 %v174, %v214
  %216 = vadd.xlane.f32.xlu0 %v215
  %v217 = vpop.xlane.xlu0 %216
  %v218 = vsel %vm46, %v177, 0.0
  %v219 = vadd.f32 %v176, %v218
  %220 = vadd.xlane.f32.xlu0 %v219
  %v221 = vpop.xlane.xlu0 %220
  %v222 = vsel %vm46, %v179, 0.0
  %v223 = vadd.f32 %v178, %v222
  %224 = vadd.xlane.f32.xlu0 %v223
  %v225 = vpop.xlane.xlu0 %224
  %v226 = vsel %vm46, %v181, 0.0
  %v227 = vadd.f32 %v180, %v226
  %228 = vadd.xlane.f32.xlu0 %v227
  %v229 = vpop.xlane.xlu0 %228
  %v230 = vsel %vm46, %v183, 0.0
  %v231 = vadd.f32 %v182, %v230
  %232 = vadd.xlane.f32.xlu0 %v231
  %v233 = vpop.xlane.xlu0 %232
  %v234 = vsel %vm46, %v185, 0.0
  %v235 = vadd.f32 %v184, %v234
  %236 = vadd.xlane.f32.xlu0 %v235
  %v237 = vpop.xlane.xlu0 %236
  %v238 = vsel %vm46, %v187, 0.0
  %v239 = vadd.f32 %v186, %v238
  %240 = vadd.xlane.f32.xlu0 %v239
  %v241 = vpop.xlane.xlu0 %240
  %v242 = vsel %vm46, %v189, 0.0
  %v243 = vadd.f32 %v188, %v242
  %244 = vadd.xlane.f32.xlu0 %v243
  %v245 = vpop.xlane.xlu0 %244
  %v246 = vsel %vm46, %v191, 0.0
  %v247 = vadd.f32 %v190, %v246
  %248 = vadd.xlane.f32.xlu0 %v247
  %v249 = vpop.xlane.xlu0 %248
  %v250 = vsel %vm46, %v193, 0.0
  %v251 = vadd.f32 %v192, %v250
  %252 = vadd.xlane.f32.xlu0 %v251
  %v253 = vpop.xlane.xlu0 %252
  %v254 = vsel %vm46, %v195, 0.0
  %v255 = vadd.f32 %v194, %v254
  %256 = vadd.xlane.f32.xlu0 %v255
  %v257 = vpop.xlane.xlu0 %256
  %v258 = vsel %vm46, %v197, 0.0
  %v259 = vadd.f32 %v196, %v258
  %260 = vadd.xlane.f32.xlu0 %v259
  %v261 = vpop.xlane.xlu0 %260
  %v262 = vmul.f32 %v201, %v117
  %v263 = vmul.f32 %v205, %v117
  %v264 = vmul.f32 %v209, %v117
  %v265 = vmul.f32 %v213, %v117
  %v266 = vmul.f32 %v217, %v117
  %v267 = vmul.f32 %v221, %v117
  %v268 = vmul.f32 %v225, %v117
  %v269 = vmul.f32 %v229, %v117
  %v270 = vmul.f32 %v233, %v117
  %v271 = vmul.f32 %v237, %v117
  %v272 = vmul.f32 %v241, %v117
  %v273 = vmul.f32 %v245, %v117
  %v274 = vmul.f32 %v249, %v117
  %v275 = vmul.f32 %v253, %v117
  %v276 = vmul.f32 %v257, %v117
  %v277 = vmul.f32 %v261, %v117
  %v278 = vadd.f32 %v262, 0.001
  %v279 = vadd.f32 %v263, 0.001
  %v280 = vadd.f32 %v264, 0.001
  %v281 = vadd.f32 %v265, 0.001
  %v282 = vadd.f32 %v266, 0.001
  %v283 = vadd.f32 %v267, 0.001
  %v284 = vadd.f32 %v268, 0.001
  %v285 = vadd.f32 %v269, 0.001
  %v286 = vadd.f32 %v270, 0.001
  %v287 = vadd.f32 %v271, 0.001
  %v288 = vadd.f32 %v272, 0.001
  %v289 = vadd.f32 %v273, 0.001
  %v290 = vadd.f32 %v274, 0.001
  %v291 = vadd.f32 %v275, 0.001
  %v292 = vadd.f32 %v276, 0.001
  %v293 = vadd.f32 %v277, 0.001
  %v294 = vrsqrt.pop %v278
  %v295 = vmul.f32 %v294, %v278
  %v296 = vmul.f32 %v295, %v294
  %v297 = vmul.f32 0.5, %v296
  %v298 = vsub.f32 1.5, %v297
  %v299 = vmul.f32 %v294, %v298
  %vm300 = vweird.f32 %v278
  %vm301 = vweird.f32 %v294
  %vm302 = vmor %vm300, %vm301
  %v303 = vsel %vm302, %v294, %v299
  %v304 = vrsqrt.pop %v279
  %v305 = vmul.f32 %v304, %v279
  %v306 = vmul.f32 %v305, %v304
  %v307 = vmul.f32 0.5, %v306
  %v308 = vsub.f32 1.5, %v307
  %v309 = vmul.f32 %v304, %v308
  %vm310 = vweird.f32 %v279
  %vm311 = vweird.f32 %v304
  %vm312 = vmor %vm310, %vm311
  %v313 = vsel %vm312, %v304, %v309
  %v314 = vrsqrt.pop %v280
  %v315 = vmul.f32 %v314, %v280
  %v316 = vmul.f32 %v315, %v314
  %v317 = vmul.f32 0.5, %v316
  %v318 = vsub.f32 1.5, %v317
  %v319 = vmul.f32 %v314, %v318
  %vm320 = vweird.f32 %v280
  %vm321 = vweird.f32 %v314
  %vm322 = vmor %vm320, %vm321
  %v323 = vsel %vm322, %v314, %v319
  %v324 = vrsqrt.pop %v281
  %v325 = vmul.f32 %v324, %v281
  %v326 = vmul.f32 %v325, %v324
  %v327 = vmul.f32 0.5, %v326
  %v328 = vsub.f32 1.5, %v327
  %v329 = vmul.f32 %v324, %v328
  %vm330 = vweird.f32 %v281
  %vm331 = vweird.f32 %v324
  %vm332 = vmor %vm330, %vm331
  %v333 = vsel %vm332, %v324, %v329
  %v334 = vrsqrt.pop %v282
  %v335 = vmul.f32 %v334, %v282
  %v336 = vmul.f32 %v335, %v334
  %v337 = vmul.f32 0.5, %v336
  %v338 = vsub.f32 1.5, %v337
  %v339 = vmul.f32 %v334, %v338
  %vm340 = vweird.f32 %v282
  %vm341 = vweird.f32 %v334
  %vm342 = vmor %vm340, %vm341
  %v343 = vsel %vm342, %v334, %v339
  %v344 = vrsqrt.pop %v283
  %v345 = vmul.f32 %v344, %v283
  %v346 = vmul.f32 %v345, %v344
  %v347 = vmul.f32 0.5, %v346
  %v348 = vsub.f32 1.5, %v347
  %v349 = vmul.f32 %v344, %v348
  %vm350 = vweird.f32 %v283
  %vm351 = vweird.f32 %v344
  %vm352 = vmor %vm350, %vm351
  %v353 = vsel %vm352, %v344, %v349
  %v354 = vrsqrt.pop %v284
  %v355 = vmul.f32 %v354, %v284
  %v356 = vmul.f32 %v355, %v354
  %v357 = vmul.f32 0.5, %v356
  %v358 = vsub.f32 1.5, %v357
  %v359 = vmul.f32 %v354, %v358
  %vm360 = vweird.f32 %v284
  %vm361 = vweird.f32 %v354
  %vm362 = vmor %vm360, %vm361
  %v363 = vsel %vm362, %v354, %v359
  %v364 = vrsqrt.pop %v285
  %v365 = vmul.f32 %v364, %v285
  %v366 = vmul.f32 %v365, %v364
  %v367 = vmul.f32 0.5, %v366
  %v368 = vsub.f32 1.5, %v367
  %v369 = vmul.f32 %v364, %v368
  %vm370 = vweird.f32 %v285
  %vm371 = vweird.f32 %v364
  %vm372 = vmor %vm370, %vm371
  %v373 = vsel %vm372, %v364, %v369
  %v374 = vrsqrt.pop %v286
  %v375 = vmul.f32 %v374, %v286
  %v376 = vmul.f32 %v375, %v374
  %v377 = vmul.f32 0.5, %v376
  %v378 = vsub.f32 1.5, %v377
  %v379 = vmul.f32 %v374, %v378
  %vm380 = vweird.f32 %v286
  %vm381 = vweird.f32 %v374
  %vm382 = vmor %vm380, %vm381
  %v383 = vsel %vm382, %v374, %v379
  %v384 = vrsqrt.pop %v287
  %v385 = vmul.f32 %v384, %v287
  %v386 = vmul.f32 %v385, %v384
  %v387 = vmul.f32 0.5, %v386
  %v388 = vsub.f32 1.5, %v387
  %v389 = vmul.f32 %v384, %v388
  %vm390 = vweird.f32 %v287
  %vm391 = vweird.f32 %v384
  %vm392 = vmor %vm390, %vm391
  %v393 = vsel %vm392, %v384, %v389
  %v394 = vrsqrt.pop %v288
  %v395 = vmul.f32 %v394, %v288
  %v396 = vmul.f32 %v395, %v394
  %v397 = vmul.f32 0.5, %v396
  %v398 = vsub.f32 1.5, %v397
  %v399 = vmul.f32 %v394, %v398
  %vm400 = vweird.f32 %v288
  %vm401 = vweird.f32 %v394
  %vm402 = vmor %vm400, %vm401
  %v403 = vsel %vm402, %v394, %v399
  %v404 = vrsqrt.pop %v289
  %v405 = vmul.f32 %v404, %v289
  %v406 = vmul.f32 %v405, %v404
  %v407 = vmul.f32 0.5, %v406
  %v408 = vsub.f32 1.5, %v407
  %v409 = vmul.f32 %v404, %v408
  %vm410 = vweird.f32 %v289
  %vm411 = vweird.f32 %v404
  %vm412 = vmor %vm410, %vm411
  %v413 = vsel %vm412, %v404, %v409
  %v414 = vrsqrt.pop %v290
  %v415 = vmul.f32 %v414, %v290
  %v416 = vmul.f32 %v415, %v414
  %v417 = vmul.f32 0.5, %v416
  %v418 = vsub.f32 1.5, %v417
  %v419 = vmul.f32 %v414, %v418
  %vm420 = vweird.f32 %v290
  %vm421 = vweird.f32 %v414
  %vm422 = vmor %vm420, %vm421
  %v423 = vsel %vm422, %v414, %v419
  %v424 = vrsqrt.pop %v291
  %v425 = vmul.f32 %v424, %v291
  %v426 = vmul.f32 %v425, %v424
  %v427 = vmul.f32 0.5, %v426
  %v428 = vsub.f32 1.5, %v427
  %v429 = vmul.f32 %v424, %v428
  %vm430 = vweird.f32 %v291
  %vm431 = vweird.f32 %v424
  %vm432 = vmor %vm430, %vm431
  %v433 = vsel %vm432, %v424, %v429
  %v434 = vrsqrt.pop %v292
  %v435 = vmul.f32 %v434, %v292
  %v436 = vmul.f32 %v435, %v434
  %v437 = vmul.f32 0.5, %v436
  %v438 = vsub.f32 1.5, %v437
  %v439 = vmul.f32 %v434, %v438
  %vm440 = vweird.f32 %v292
  %vm441 = vweird.f32 %v434
  %vm442 = vmor %vm440, %vm441
  %v443 = vsel %vm442, %v434, %v439
  %v444 = vrsqrt.pop %v293
  %v445 = vmul.f32 %v444, %v293
  %v446 = vmul.f32 %v445, %v444
  %v447 = vmul.f32 0.5, %v446
  %v448 = vsub.f32 1.5, %v447
  %v449 = vmul.f32 %v444, %v448
  %vm450 = vweird.f32 %v293
  %vm451 = vweird.f32 %v444
  %vm452 = vmor %vm450, %vm451
  %v453 = vsel %vm452, %v444, %v449
  %v454 = vld [vmem:[%s1] sm:$0xff]
  %v455 = vld [vmem:[%s1 + $0x8] sm:$0xff]
  %v456 = vld [vmem:[%s1 + $0x10] sm:$0xff]
  %v457 = vld [vmem:[%s1 + $0x18] sm:$0xff]
  %v458 = vld [vmem:[%s1 + $0x20] sm:$0xff]
  %v459 = vld [vmem:[%s1 + $0x28] sm:$0xff]
  %v460 = vld [vmem:[%s1 + $0x30] sm:$0xff]
  %v461 = vld [vmem:[%s1 + $0x38] sm:$0xff]
  %v462 = vld [vmem:[%s1 + $0x40] sm:$0xff]
  %v463 = vld [vmem:[%s1 + $0x48] sm:$0xff]
  %v464 = vld [vmem:[%s1 + $0x50] sm:$0xff]
  %v465 = vld [vmem:[%s1 + $0x58] sm:$0xff]
  %v466 = vld [vmem:[%s1 + $0x60] sm:$0xff]
  %v467 = vld [vmem:[%s1 + $0x68] sm:$0xff]
  %v468 = vld [vmem:[%s1 + $0x70] sm:$0xff]
  %v469 = vld [vmem:[%s1 + $0x78] sm:$0xff]
  %v470 = vmul.f32 %v303, %v454
  %v471 = vmul.f32 %v313, %v455
  %v472 = vmul.f32 %v323, %v456
  %v473 = vmul.f32 %v333, %v457
  %v474 = vmul.f32 %v343, %v458
  %v475 = vmul.f32 %v353, %v459
  %v476 = vmul.f32 %v363, %v460
  %v477 = vmul.f32 %v373, %v461
  %v478 = vmul.f32 %v383, %v462
  %v479 = vmul.f32 %v393, %v463
  %v480 = vmul.f32 %v403, %v464
  %v481 = vmul.f32 %v413, %v465
  %v482 = vmul.f32 %v423, %v466
  %v483 = vmul.f32 %v433, %v467
  %v484 = vmul.f32 %v443, %v468
  %v485 = vmul.f32 %v453, %v469
  %487 = vset.pattern.permute.xlu0 0
  %488 = vperm.xlu0 %487, %v470
  %v489 = vpop.permute.xlu0 %488
  %492 = vset.pattern.permute.xlu0 0
  %493 = vperm.xlu0 %492, %v471
  %v494 = vpop.permute.xlu0 %493
  %497 = vset.pattern.permute.xlu0 0
  %498 = vperm.xlu0 %497, %v472
  %v499 = vpop.permute.xlu0 %498
  %502 = vset.pattern.permute.xlu0 0
  %503 = vperm.xlu0 %502, %v473
  %v504 = vpop.permute.xlu0 %503
  %507 = vset.pattern.permute.xlu0 0
  %508 = vperm.xlu0 %507, %v474
  %v509 = vpop.permute.xlu0 %508
  %512 = vset.pattern.permute.xlu0 0
  %513 = vperm.xlu0 %512, %v475
  %v514 = vpop.permute.xlu0 %513
  %517 = vset.pattern.permute.xlu0 0
  %518 = vperm.xlu0 %517, %v476
  %v519 = vpop.permute.xlu0 %518
  %522 = vset.pattern.permute.xlu0 0
  %523 = vperm.xlu0 %522, %v477
  %v524 = vpop.permute.xlu0 %523
  %527 = vset.pattern.permute.xlu0 0
  %528 = vperm.xlu0 %527, %v478
  %v529 = vpop.permute.xlu0 %528
  %532 = vset.pattern.permute.xlu0 0
  %533 = vperm.xlu0 %532, %v479
  %v534 = vpop.permute.xlu0 %533
  %537 = vset.pattern.permute.xlu0 0
  %538 = vperm.xlu0 %537, %v480
  %v539 = vpop.permute.xlu0 %538
  %542 = vset.pattern.permute.xlu0 0
  %543 = vperm.xlu0 %542, %v481
  %v544 = vpop.permute.xlu0 %543
  %547 = vset.pattern.permute.xlu0 0
  %548 = vperm.xlu0 %547, %v482
  %v549 = vpop.permute.xlu0 %548
  %552 = vset.pattern.permute.xlu0 0
  %553 = vperm.xlu0 %552, %v483
  %v554 = vpop.permute.xlu0 %553
  %557 = vset.pattern.permute.xlu0 0
  %558 = vperm.xlu0 %557, %v484
  %v559 = vpop.permute.xlu0 %558
  %562 = vset.pattern.permute.xlu0 0
  %563 = vperm.xlu0 %562, %v485
  %v564 = vpop.permute.xlu0 %563
  %v566 = vmul.f32 %v134, %v489
  %v567 = vmul.f32 %v135, %v489
  %v568 = vmul.f32 %v136, %v494
  %v569 = vmul.f32 %v137, %v494
  %v570 = vmul.f32 %v138, %v499
  %v571 = vmul.f32 %v139, %v499
  %v572 = vmul.f32 %v140, %v504
  %v573 = vmul.f32 %v141, %v504
  %v574 = vmul.f32 %v142, %v509
  %v575 = vmul.f32 %v143, %v509
  %v576 = vmul.f32 %v144, %v514
  %v577 = vmul.f32 %v145, %v514
  %v578 = vmul.f32 %v146, %v519
  %v579 = vmul.f32 %v147, %v519
  %v580 = vmul.f32 %v148, %v524
  %v581 = vmul.f32 %v149, %v524
  %v582 = vmul.f32 %v150, %v529
  %v583 = vmul.f32 %v151, %v529
  %v584 = vmul.f32 %v152, %v534
  %v585 = vmul.f32 %v153, %v534
  %v586 = vmul.f32 %v154, %v539
  %v587 = vmul.f32 %v155, %v539
  %v588 = vmul.f32 %v156, %v544
  %v589 = vmul.f32 %v157, %v544
  %v590 = vmul.f32 %v158, %v549
  %v591 = vmul.f32 %v159, %v549
  %v592 = vmul.f32 %v160, %v554
  %v593 = vmul.f32 %v161, %v554
  %v594 = vmul.f32 %v162, %v559
  %v595 = vmul.f32 %v163, %v559
  %v596 = vmul.f32 %v164, %v564
  %v597 = vmul.f32 %v165, %v564
  %599 = vset.pattern.permute.xlu0 1
  %600 = vperm.xlu0 %599, %v454
  %v601 = vpop.permute.xlu0 %600
  %604 = vset.pattern.permute.xlu0 1
  %605 = vperm.xlu0 %604, %v455
  %v606 = vpop.permute.xlu0 %605
  %609 = vset.pattern.permute.xlu0 1
  %610 = vperm.xlu0 %609, %v456
  %v611 = vpop.permute.xlu0 %610
  %614 = vset.pattern.permute.xlu0 1
  %615 = vperm.xlu0 %614, %v457
  %v616 = vpop.permute.xlu0 %615
  %619 = vset.pattern.permute.xlu0 1
  %620 = vperm.xlu0 %619, %v458
  %v621 = vpop.permute.xlu0 %620
  %624 = vset.pattern.permute.xlu0 1
  %625 = vperm.xlu0 %624, %v459
  %v626 = vpop.permute.xlu0 %625
  %629 = vset.pattern.permute.xlu0 1
  %630 = vperm.xlu0 %629, %v460
  %v631 = vpop.permute.xlu0 %630
  %634 = vset.pattern.permute.xlu0 1
  %635 = vperm.xlu0 %634, %v461
  %v636 = vpop.permute.xlu0 %635
  %639 = vset.pattern.permute.xlu0 1
  %640 = vperm.xlu0 %639, %v462
  %v641 = vpop.permute.xlu0 %640
  %644 = vset.pattern.permute.xlu0 1
  %645 = vperm.xlu0 %644, %v463
  %v646 = vpop.permute.xlu0 %645
  %649 = vset.pattern.permute.xlu0 1
  %650 = vperm.xlu0 %649, %v464
  %v651 = vpop.permute.xlu0 %650
  %654 = vset.pattern.permute.xlu0 1
  %655 = vperm.xlu0 %654, %v465
  %v656 = vpop.permute.xlu0 %655
  %659 = vset.pattern.permute.xlu0 1
  %660 = vperm.xlu0 %659, %v466
  %v661 = vpop.permute.xlu0 %660
  %664 = vset.pattern.permute.xlu0 1
  %665 = vperm.xlu0 %664, %v467
  %v666 = vpop.permute.xlu0 %665
  %669 = vset.pattern.permute.xlu0 1
  %670 = vperm.xlu0 %669, %v468
  %v671 = vpop.permute.xlu0 %670
  %674 = vset.pattern.permute.xlu0 1
  %675 = vperm.xlu0 %674, %v469
  %v676 = vpop.permute.xlu0 %675
  %v678 = vadd.f32 %v566, %v601
  %v679 = vadd.f32 %v567, %v601
  %v680 = vadd.f32 %v568, %v606
  %v681 = vadd.f32 %v569, %v606
  %v682 = vadd.f32 %v570, %v611
  %v683 = vadd.f32 %v571, %v611
  %v684 = vadd.f32 %v572, %v616
  %v685 = vadd.f32 %v573, %v616
  %v686 = vadd.f32 %v574, %v621
  %v687 = vadd.f32 %v575, %v621
  %v688 = vadd.f32 %v576, %v626
  %v689 = vadd.f32 %v577, %v626
  %v690 = vadd.f32 %v578, %v631
  %v691 = vadd.f32 %v579, %v631
  %v692 = vadd.f32 %v580, %v636
  %v693 = vadd.f32 %v581, %v636
  %v694 = vadd.f32 %v582, %v641
  %v695 = vadd.f32 %v583, %v641
  %v696 = vadd.f32 %v584, %v646
  %v697 = vadd.f32 %v585, %v646
  %v698 = vadd.f32 %v586, %v651
  %v699 = vadd.f32 %v587, %v651
  %v700 = vadd.f32 %v588, %v656
  %v701 = vadd.f32 %v589, %v656
  %v702 = vadd.f32 %v590, %v661
  %v703 = vadd.f32 %v591, %v661
  %v704 = vadd.f32 %v592, %v666
  %v705 = vadd.f32 %v593, %v666
  %v706 = vadd.f32 %v594, %v671
  %v707 = vadd.f32 %v595, %v671
  %v708 = vadd.f32 %v596, %v676
  %v709 = vadd.f32 %v597, %v676
  %v710 = vmax.f32 %v678, 0.0
  %v711 = vmax.f32 %v679, 0.0
  %v712 = vmax.f32 %v680, 0.0
  %v713 = vmax.f32 %v681, 0.0
  %v714 = vmax.f32 %v682, 0.0
  %v715 = vmax.f32 %v683, 0.0
  %v716 = vmax.f32 %v684, 0.0
  %v717 = vmax.f32 %v685, 0.0
  %v718 = vmax.f32 %v686, 0.0
  %v719 = vmax.f32 %v687, 0.0
  %v720 = vmax.f32 %v688, 0.0
  %v721 = vmax.f32 %v689, 0.0
  %v722 = vmax.f32 %v690, 0.0
  %v723 = vmax.f32 %v691, 0.0
  %v724 = vmax.f32 %v692, 0.0
  %v725 = vmax.f32 %v693, 0.0
  %v726 = vmax.f32 %v694, 0.0
  %v727 = vmax.f32 %v695, 0.0
  %v728 = vmax.f32 %v696, 0.0
  %v729 = vmax.f32 %v697, 0.0
  %v730 = vmax.f32 %v698, 0.0
  %v731 = vmax.f32 %v699, 0.0
  %v732 = vmax.f32 %v700, 0.0
  %v733 = vmax.f32 %v701, 0.0
  %v734 = vmax.f32 %v702, 0.0
  %v735 = vmax.f32 %v703, 0.0
  %v736 = vmax.f32 %v704, 0.0
  %v737 = vmax.f32 %v705, 0.0
  %v738 = vmax.f32 %v706, 0.0
  %v739 = vmax.f32 %v707, 0.0
  %v740 = vmax.f32 %v708, 0.0
  %v741 = vmax.f32 %v709, 0.0
  %742 = vxpose.xlu0.b32.start [1/16] %v710, 128
  %743 = vxpose.xlu0.b32.cont [2/16] %v712, 128
  %744 = vxpose.xlu0.b32.cont [3/16] %v714, 128
  %745 = vxpose.xlu0.b32.cont [4/16] %v716, 128
  %746 = vxpose.xlu0.b32.cont [5/16] %v718, 128
  %747 = vxpose.xlu0.b32.cont [6/16] %v720, 128
  %748 = vxpose.xlu0.b32.cont [7/16] %v722, 128
  %749 = vxpose.xlu0.b32.cont [8/16] %v724, 128
  %750 = vxpose.xlu0.b32.cont [9/16] %v726, 128
  %751 = vxpose.xlu0.b32.cont [10/16] %v728, 128
  %752 = vxpose.xlu0.b32.cont [11/16] %v730, 128
  %753 = vxpose.xlu0.b32.cont [12/16] %v732, 128
  %754 = vxpose.xlu0.b32.cont [13/16] %v734, 128
  %755 = vxpose.xlu0.b32.cont [14/16] %v736, 128
  %756 = vxpose.xlu0.b32.cont [15/16] %v738, 128
  %757 = vxpose.xlu0.b32.end [16/16] %v740, 128
  %v758 = vpop.trf.xlu0
  %v759 = vpop.trf.xlu0
  %v760 = vpop.trf.xlu0
  %v761 = vpop.trf.xlu0
  %v762 = vpop.trf.xlu0
  %v763 = vpop.trf.xlu0
  %v764 = vpop.trf.xlu0
  %v765 = vpop.trf.xlu0
  %v766 = vpop.trf.xlu0
  %v767 = vpop.trf.xlu0
  %v768 = vpop.trf.xlu0
  %v769 = vpop.trf.xlu0
  %v770 = vpop.trf.xlu0
  %v771 = vpop.trf.xlu0
  %v772 = vpop.trf.xlu0
  %v773 = vpop.trf.xlu0
  %774 = vxpose.xlu0.b32.start [1/16] %v711, 128
  %775 = vxpose.xlu0.b32.cont [2/16] %v713, 128
  %776 = vxpose.xlu0.b32.cont [3/16] %v715, 128
  %777 = vxpose.xlu0.b32.cont [4/16] %v717, 128
  %778 = vxpose.xlu0.b32.cont [5/16] %v719, 128
  %779 = vxpose.xlu0.b32.cont [6/16] %v721, 128
  %780 = vxpose.xlu0.b32.cont [7/16] %v723, 128
  %781 = vxpose.xlu0.b32.cont [8/16] %v725, 128
  %782 = vxpose.xlu0.b32.cont [9/16] %v727, 128
  %783 = vxpose.xlu0.b32.cont [10/16] %v729, 128
  %784 = vxpose.xlu0.b32.cont [11/16] %v731, 128
  %785 = vxpose.xlu0.b32.cont [12/16] %v733, 128
  %786 = vxpose.xlu0.b32.cont [13/16] %v735, 128
  %787 = vxpose.xlu0.b32.cont [14/16] %v737, 128
  %788 = vxpose.xlu0.b32.cont [15/16] %v739, 128
  %789 = vxpose.xlu0.b32.end [16/16] %v741, 128
  %v790 = vpop.trf.xlu0
  %v791 = vpop.trf.xlu0
  %v792 = vpop.trf.xlu0
  %v793 = vpop.trf.xlu0
  %v794 = vpop.trf.xlu0
  %v795 = vpop.trf.xlu0
  %v796 = vpop.trf.xlu0
  %v797 = vpop.trf.xlu0
  %v798 = vpop.trf.xlu0
  %v799 = vpop.trf.xlu0
  %v800 = vpop.trf.xlu0
  %v801 = vpop.trf.xlu0
  %v802 = vpop.trf.xlu0
  %v803 = vpop.trf.xlu0
  %v804 = vpop.trf.xlu0
  %v805 = vpop.trf.xlu0
  %806 = vst [vmem:[#allocation2] sm:$0xff] 0.0
  %807 = vst [vmem:[#allocation2 + $0x8] sm:$0xff] 0.0
  %808 = vst [vmem:[#allocation2 + $0x10] sm:$0xff] 0.0
  %809 = vst [vmem:[#allocation2 + $0x18] sm:$0xff] 0.0
  %810 = vst [vmem:[#allocation2 + $0x20] sm:$0xf] 0.0
  %811 = vst [vmem:[#allocation2 + $0xb4] sm:$0xff] 0.0
  %812 = vst [vmem:[#allocation2 + $0xbc] sm:$0xff] 0.0
  %813 = vst [vmem:[#allocation2 + $0xc4] sm:$0xff] 0.0
  %814 = vst [vmem:[#allocation2 + $0xcc] sm:$0xff] 0.0
  %815 = vst [vmem:[#allocation2 + $0xd4] sm:$0xf] 0.0
  %816 = vst [vmem:[#allocation2 + $0x24] sm:$0xff] %v758
  %817 = vst [vmem:[#allocation2 + $0x2c] sm:$0xff] %v759
  %818 = vst [vmem:[#allocation2 + $0x34] sm:$0xff] %v760
  %819 = vst [vmem:[#allocation2 + $0x3c] sm:$0xff] %v761
  %820 = vst [vmem:[#allocation2 + $0x44] sm:$0xff] %v762
  %821 = vst [vmem:[#allocation2 + $0x4c] sm:$0xff] %v763
  %822 = vst [vmem:[#allocation2 + $0x54] sm:$0xff] %v764
  %823 = vst [vmem:[#allocation2 + $0x5c] sm:$0xff] %v765
  %824 = vst [vmem:[#allocation2 + $0x64] sm:$0xff] %v766
  %825 = vst [vmem:[#allocation2 + $0x6c] sm:$0xff] %v767
  %826 = vst [vmem:[#allocation2 + $0x74] sm:$0xff] %v768
  %827 = vst [vmem:[#allocation2 + $0x7c] sm:$0xff] %v769
  %828 = vst [vmem:[#allocation2 + $0x84] sm:$0xff] %v770
  %829 = vst [vmem:[#allocation2 + $0x8c] sm:$0xff] %v771
  %830 = vst [vmem:[#allocation2 + $0x94] sm:$0xff] %v772
  %831 = vst [vmem:[#allocation2 + $0x9c] sm:$0xff] %v773
  %832 = vst [vmem:[#allocation2 + $0xa4] sm:$0xff] %v790
  %833 = vst [vmem:[#allocation2 + $0xac] sm:$0xff] %v791
  %v834 = vld [vmem:[#allocation2] sm:$0xff]
  %v835 = vld [vmem:[#allocation2 + $0x8] sm:$0xff]
  %v836 = vld [vmem:[#allocation2 + $0x10] sm:$0xff]
  %v837 = vld [vmem:[#allocation2 + $0x18] sm:$0xff]
  %v838 = vld [vmem:[#allocation2 + $0x20] sm:$0xff]
  %v839 = vld [vmem:[#allocation2 + $0x28] sm:$0xff]
  %v840 = vld [vmem:[#allocation2 + $0x30] sm:$0xff]
  %v841 = vld [vmem:[#allocation2 + $0x38] sm:$0xff]
  %v842 = vld [vmem:[#allocation2 + $0x40] sm:$0xff]
  %v843 = vld [vmem:[#allocation2 + $0x48] sm:$0xff]
  %v844 = vld [vmem:[#allocation2 + $0x50] sm:$0xff]
  %v845 = vld [vmem:[#allocation2 + $0x58] sm:$0xff]
  %v846 = vld [vmem:[#allocation2 + $0x60] sm:$0xff]
  %v847 = vld [vmem:[#allocation2 + $0x68] sm:$0xff]
  %v848 = vld [vmem:[#allocation2 + $0x70] sm:$0xff]
  %v849 = vld [vmem:[#allocation2 + $0x78] sm:$0xff]
  %v850 = vld [vmem:[#allocation2 + $0x80] sm:$0xff]
  %v851 = vld [vmem:[#allocation2 + $0x88] sm:$0xff]
  %v852 = vld [vmem:[#allocation2 + $0xc] sm:$0xff]
  %v853 = vld [vmem:[#allocation2 + $0x14] sm:$0xff]
  %v854 = vld [vmem:[#allocation2 + $0x1c] sm:$0xff]
  %v855 = vld [vmem:[#allocation2 + $0x24] sm:$0xff]
  %v856 = vld [vmem:[#allocation2 + $0x2c] sm:$0xff]
  %v857 = vld [vmem:[#allocation2 + $0x34] sm:$0xff]
  %v858 = vld [vmem:[#allocation2 + $0x3c] sm:$0xff]
  %v859 = vld [vmem:[#allocation2 + $0x44] sm:$0xff]
  %v860 = vld [vmem:[#allocation2 + $0x4c] sm:$0xff]
  %v861 = vld [vmem:[#allocation2 + $0x54] sm:$0xff]
  %v862 = vld [vmem:[#allocation2 + $0x5c] sm:$0xff]
  %v863 = vld [vmem:[#allocation2 + $0x64] sm:$0xff]
  %v864 = vld [vmem:[#allocation2 + $0x6c] sm:$0xff]
  %v865 = vld [vmem:[#allocation2 + $0x74] sm:$0xff]
  %v866 = vld [vmem:[#allocation2 + $0x7c] sm:$0xff]
  %v867 = vld [vmem:[#allocation2 + $0x84] sm:$0xff]
  %v868 = vld [vmem:[#allocation2 + $0x8c] sm:$0xff]
  %v869 = vld [vmem:[#allocation2 + $0x94] sm:$0xff]
  %v870 = vld [vmem:[#allocation2 + $0x90] sm:$0xff]
  %v871 = vld [vmem:[#allocation2 + $0x98] sm:$0xff]
  %v872 = vld [vmem:[#allocation2 + $0xa0] sm:$0xff]
  %v873 = vld [vmem:[#allocation2 + $0x9c] sm:$0xff]
  %v874 = vld [vmem:[#allocation2 + $0xa4] sm:$0xff]
  %v875 = vld [vmem:[#allocation2 + $0xac] sm:$0xff]
  %v876 = vld [vmem:[#allocation2 + $0xa8] sm:$0xff]
  %v877 = vld [vmem:[#allocation2 + $0xb0] sm:$0xff]
  %v878 = vld [vmem:[#allocation2 + $0xb8] sm:$0xff]
  %v879 = vld [vmem:[#allocation2 + $0xb4] sm:$0xff]
  %v880 = vld [vmem:[#allocation2 + $0xbc] sm:$0xff]
  %v881 = vld [vmem:[#allocation2 + $0xc4] sm:$0xff]
  %v882 = vld [vmem:[#allocation2 + $0x48] sm:$0xff]
  %v883 = vld [vmem:[#allocation2 + $0x50] sm:$0xff]
  %v884 = vld [vmem:[#allocation2 + $0x58] sm:$0xff]
  %v885 = vld [vmem:[#allocation2 + $0x60] sm:$0xff]
  %v886 = vld [vmem:[#allocation2 + $0x68] sm:$0xff]
  %v887 = vld [vmem:[#allocation2 + $0x70] sm:$0xff]
  %v888 = vld [vmem:[#allocation2 + $0x78] sm:$0xff]
  %v889 = vld [vmem:[#allocation2 + $0x80] sm:$0xff]
  %v890 = vld [vmem:[#allocation2 + $0x88] sm:$0xff]
  %v891 = vld [vmem:[#allocation2 + $0x90] sm:$0xff]
  %v892 = vld [vmem:[#allocation2 + $0x98] sm:$0xff]
  %v893 = vld [vmem:[#allocation2 + $0xa0] sm:$0xff]
  %v894 = vld [vmem:[#allocation2 + $0xa8] sm:$0xff]
  %v895 = vld [vmem:[#allocation2 + $0xb0] sm:$0xff]
  %v896 = vld [vmem:[#allocation2 + $0xb8] sm:$0xff]
  %v897 = vld [vmem:[#allocation2 + $0xc0] sm:$0xff]
  %v898 = vld [vmem:[#allocation2 + $0xc8] sm:$0xff]
  %v899 = vld [vmem:[#allocation2 + $0xd0] sm:$0xff]
  %v900 = vld [vmem:[%s2] sm:$0xff]
  %v901 = vld [vmem:[%s2 + $0x8] sm:$0xff]
  %v902 = vld [vmem:[%s2 + $0x10] sm:$0xff]
  %v903 = vld [vmem:[%s2 + $0x18] sm:$0xff]
  %v904 = vld [vmem:[%s2 + $0x20] sm:$0xff]
  %v905 = vld [vmem:[%s2 + $0x28] sm:$0xff]
  %v906 = vld [vmem:[%s2 + $0x30] sm:$0xff]
  %v907 = vld [vmem:[%s2 + $0x38] sm:$0xff]
  %v908 = vld [vmem:[%s2 + $0x40] sm:$0xff]
  %v909 = vld [vmem:[%s2 + $0x48] sm:$0xff]
  %v910 = vld [vmem:[%s2 + $0x50] sm:$0xff]
  %v911 = vld [vmem:[%s2 + $0x58] sm:$0xff]
  %v912 = vld [vmem:[%s2 + $0x60] sm:$0xff]
  %v913 = vld [vmem:[%s2 + $0x68] sm:$0xff]
  %v914 = vld [vmem:[%s2 + $0x70] sm:$0xff]
  %v915 = vld [vmem:[%s2 + $0x78] sm:$0xff]
  %v916 = vld [vmem:[%s2 + $0x80] sm:$0xff]
  %v917 = vld [vmem:[%s2 + $0x88] sm:$0xff]
  %v918 = vld [vmem:[%s2 + $0x90] sm:$0xff]
  %v919 = vld [vmem:[%s2 + $0x98] sm:$0xff]
  %v920 = vld [vmem:[%s2 + $0xa0] sm:$0xff]
  %v921 = vld [vmem:[%s2 + $0xa8] sm:$0xff]
  %v922 = vld [vmem:[%s2 + $0xb0] sm:$0xff]
  %v923 = vld [vmem:[%s2 + $0xb8] sm:$0xff]
  %v924 = vld [vmem:[%s2 + $0xc0] sm:$0xff]
  %v925 = vld [vmem:[%s2 + $0xc8] sm:$0xff]
  %v926 = vld [vmem:[%s2 + $0xd0] sm:$0xff]
  %v927 = vld [vmem:[%s2 + $0xd8] sm:$0xff]
  %v928 = vld [vmem:[%s2 + $0xe0] sm:$0xff]
  %v929 = vld [vmem:[%s2 + $0xe8] sm:$0xff]
  %v930 = vld [vmem:[%s2 + $0xf0] sm:$0xff]
  %v931 = vld [vmem:[%s2 + $0xf8] sm:$0xff]
  %v932 = vld [vmem:[%s2 + $0x100] sm:$0xff]
  %v933 = vld [vmem:[%s2 + $0x108] sm:$0xff]
  %v934 = vld [vmem:[%s2 + $0x110] sm:$0xff]
  %v935 = vld [vmem:[%s2 + $0x118] sm:$0xff]
  %v936 = vld [vmem:[%s2 + $0x120] sm:$0xff]
  %v937 = vld [vmem:[%s2 + $0x128] sm:$0xff]
  %v938 = vld [vmem:[%s2 + $0x130] sm:$0xff]
  %v939 = vld [vmem:[%s2 + $0x138] sm:$0xff]
  %v940 = vld [vmem:[%s2 + $0x140] sm:$0xff]
  %v941 = vld [vmem:[%s2 + $0x148] sm:$0xff]
  %v942 = vld [vmem:[%s2 + $0x150] sm:$0xff]
  %v943 = vld [vmem:[%s2 + $0x158] sm:$0xff]
  %v944 = vld [vmem:[%s2 + $0x160] sm:$0xff]
  %v945 = vld [vmem:[%s2 + $0x168] sm:$0xff]
  %v946 = vld [vmem:[%s2 + $0x170] sm:$0xff]
  %v947 = vld [vmem:[%s2 + $0x178] sm:$0xff]
  %v948 = vld [vmem:[%s2 + $0x180] sm:$0xff]
  %v949 = vld [vmem:[%s2 + $0x188] sm:$0xff]
  %v950 = vld [vmem:[%s2 + $0x190] sm:$0xff]
  %v951 = vld [vmem:[%s2 + $0x198] sm:$0xff]
  %v952 = vld [vmem:[%s2 + $0x1a0] sm:$0xff]
  %v953 = vld [vmem:[%s2 + $0x1a8] sm:$0xff]
  %v954 = vld [vmem:[%s2 + $0x1b0] sm:$0xff]
  %v955 = vld [vmem:[%s2 + $0x1b8] sm:$0xff]
  %v956 = vld [vmem:[%s2 + $0x1c0] sm:$0xff]
  %v957 = vld [vmem:[%s2 + $0x1c8] sm:$0xff]
  %v958 = vld [vmem:[%s2 + $0x1d0] sm:$0xff]
  %v959 = vld [vmem:[%s2 + $0x1d8] sm:$0xff]
  %v960 = vld [vmem:[%s2 + $0x1e0] sm:$0xff]
  %v961 = vld [vmem:[%s2 + $0x1e8] sm:$0xff]
  %v962 = vld [vmem:[%s2 + $0x1f0] sm:$0xff]
  %v963 = vld [vmem:[%s2 + $0x1f8] sm:$0xff]
  %v964 = vld [vmem:[%s2 + $0x200] sm:$0xff]
  %v965 = vld [vmem:[%s2 + $0x208] sm:$0xff]
  %v966 = vld [vmem:[%s2 + $0x210] sm:$0xff]
  %v967 = vld [vmem:[%s2 + $0x218] sm:$0xff]
  %v968 = vld [vmem:[%s2 + $0x220] sm:$0xff]
  %v969 = vld [vmem:[%s2 + $0x228] sm:$0xff]
  %v970 = vld [vmem:[%s2 + $0x230] sm:$0xff]
  %v971 = vld [vmem:[%s2 + $0x238] sm:$0xff]
  %v972 = vld [vmem:[%s2 + $0x240] sm:$0xff]
  %v973 = vld [vmem:[%s2 + $0x248] sm:$0xff]
  %v974 = vld [vmem:[%s2 + $0x250] sm:$0xff]
  %v975 = vld [vmem:[%s2 + $0x258] sm:$0xff]
  %v976 = vld [vmem:[%s2 + $0x260] sm:$0xff]
  %v977 = vld [vmem:[%s2 + $0x268] sm:$0xff]
  %v978 = vld [vmem:[%s2 + $0x270] sm:$0xff]
  %v979 = vld [vmem:[%s2 + $0x278] sm:$0xff]
  %v980 = vld [vmem:[%s2 + $0x280] sm:$0xff]
  %v981 = vld [vmem:[%s2 + $0x288] sm:$0xff]
  %v982 = vld [vmem:[%s2 + $0x290] sm:$0xff]
  %v983 = vld [vmem:[%s2 + $0x298] sm:$0xff]
  %v984 = vld [vmem:[%s2 + $0x2a0] sm:$0xff]
  %v985 = vld [vmem:[%s2 + $0x2a8] sm:$0xff]
  %v986 = vld [vmem:[%s2 + $0x2b0] sm:$0xff]
  %v987 = vld [vmem:[%s2 + $0x2b8] sm:$0xff]
  %v988 = vld [vmem:[%s2 + $0x2c0] sm:$0xff]
  %v989 = vld [vmem:[%s2 + $0x2c8] sm:$0xff]
  %v990 = vld [vmem:[%s2 + $0x2d0] sm:$0xff]
  %v991 = vld [vmem:[%s2 + $0x2d8] sm:$0xff]
  %v992 = vld [vmem:[%s2 + $0x2e0] sm:$0xff]
  %v993 = vld [vmem:[%s2 + $0x2e8] sm:$0xff]
  %v994 = vld [vmem:[%s2 + $0x2f0] sm:$0xff]
  %v995 = vld [vmem:[%s2 + $0x2f8] sm:$0xff]
  %v996 = vld [vmem:[%s2 + $0x300] sm:$0xff]
  %v997 = vld [vmem:[%s2 + $0x308] sm:$0xff]
  %v998 = vld [vmem:[%s2 + $0x310] sm:$0xff]
  %v999 = vld [vmem:[%s2 + $0x318] sm:$0xff]
  %v1000 = vld [vmem:[%s2 + $0x320] sm:$0xff]
  %v1001 = vld [vmem:[%s2 + $0x328] sm:$0xff]
  %v1002 = vld [vmem:[%s2 + $0x330] sm:$0xff]
  %v1003 = vld [vmem:[%s2 + $0x338] sm:$0xff]
  %v1004 = vld [vmem:[%s2 + $0x340] sm:$0xff]
  %v1005 = vld [vmem:[%s2 + $0x348] sm:$0xff]
  %v1006 = vld [vmem:[%s2 + $0x350] sm:$0xff]
  %v1007 = vld [vmem:[%s2 + $0x358] sm:$0xff]
  %v1008 = vld [vmem:[%s2 + $0x360] sm:$0xff]
  %v1009 = vld [vmem:[%s2 + $0x368] sm:$0xff]
  %v1010 = vld [vmem:[%s2 + $0x370] sm:$0xff]
  %v1011 = vld [vmem:[%s2 + $0x378] sm:$0xff]
  %v1012 = vld [vmem:[%s2 + $0x380] sm:$0xff]
  %v1013 = vld [vmem:[%s2 + $0x388] sm:$0xff]
  %v1014 = vld [vmem:[%s2 + $0x390] sm:$0xff]
  %v1015 = vld [vmem:[%s2 + $0x398] sm:$0xff]
  %v1016 = vld [vmem:[%s2 + $0x3a0] sm:$0xff]
  %v1017 = vld [vmem:[%s2 + $0x3a8] sm:$0xff]
  %v1018 = vld [vmem:[%s2 + $0x3b0] sm:$0xff]
  %v1019 = vld [vmem:[%s2 + $0x3b8] sm:$0xff]
  %v1020 = vld [vmem:[%s2 + $0x3c0] sm:$0xff]
  %v1021 = vld [vmem:[%s2 + $0x3c8] sm:$0xff]
  %v1022 = vld [vmem:[%s2 + $0x3d0] sm:$0xff]
  %v1023 = vld [vmem:[%s2 + $0x3d8] sm:$0xff]
  %v1024 = vld [vmem:[%s2 + $0x3e0] sm:$0xff]
  %v1025 = vld [vmem:[%s2 + $0x3e8] sm:$0xff]
  %v1026 = vld [vmem:[%s2 + $0x3f0] sm:$0xff]
  %v1027 = vld [vmem:[%s2 + $0x3f8] sm:$0xff]
  %v1028 = vld [vmem:[%s2 + $0x400] sm:$0xff]
  %v1029 = vld [vmem:[%s2 + $0x408] sm:$0xff]
  %v1030 = vld [vmem:[%s2 + $0x410] sm:$0xff]
  %v1031 = vld [vmem:[%s2 + $0x418] sm:$0xff]
  %v1032 = vld [vmem:[%s2 + $0x420] sm:$0xff]
  %v1033 = vld [vmem:[%s2 + $0x428] sm:$0xff]
  %v1034 = vld [vmem:[%s2 + $0x430] sm:$0xff]
  %v1035 = vld [vmem:[%s2 + $0x438] sm:$0xff]
  %v1036 = vld [vmem:[%s2 + $0x440] sm:$0xff]
  %v1037 = vld [vmem:[%s2 + $0x448] sm:$0xff]
  %v1038 = vld [vmem:[%s2 + $0x450] sm:$0xff]
  %v1039 = vld [vmem:[%s2 + $0x458] sm:$0xff]
  %v1040 = vld [vmem:[%s2 + $0x460] sm:$0xff]
  %v1041 = vld [vmem:[%s2 + $0x468] sm:$0xff]
  %v1042 = vld [vmem:[%s2 + $0x470] sm:$0xff]
  %v1043 = vld [vmem:[%s2 + $0x478] sm:$0xff]
  %v1044 = vld [vmem:[%s2 + $0x480] sm:$0xff]
  %v1045 = vld [vmem:[%s2 + $0x488] sm:$0xff]
  %v1046 = vld [vmem:[%s2 + $0x490] sm:$0xff]
  %v1047 = vld [vmem:[%s2 + $0x498] sm:$0xff]
  %v1048 = vld [vmem:[%s2 + $0x4a0] sm:$0xff]
  %v1049 = vld [vmem:[%s2 + $0x4a8] sm:$0xff]
  %v1050 = vld [vmem:[%s2 + $0x4b0] sm:$0xff]
  %v1051 = vld [vmem:[%s2 + $0x4b8] sm:$0xff]
  %v1052 = vld [vmem:[%s2 + $0x4c0] sm:$0xff]
  %v1053 = vld [vmem:[%s2 + $0x4c8] sm:$0xff]
  %v1054 = vld [vmem:[%s2 + $0x4d0] sm:$0xff]
  %v1055 = vld [vmem:[%s2 + $0x4d8] sm:$0xff]
  %v1056 = vld [vmem:[%s2 + $0x4e0] sm:$0xff]
  %v1057 = vld [vmem:[%s2 + $0x4e8] sm:$0xff]
  %v1058 = vld [vmem:[%s2 + $0x4f0] sm:$0xff]
  %v1059 = vld [vmem:[%s2 + $0x4f8] sm:$0xff]
  %v1060 = vld [vmem:[%s2 + $0x500] sm:$0xff]
  %v1061 = vld [vmem:[%s2 + $0x508] sm:$0xff]
  %v1062 = vld [vmem:[%s2 + $0x510] sm:$0xff]
  %v1063 = vld [vmem:[%s2 + $0x518] sm:$0xff]
  %v1064 = vld [vmem:[%s2 + $0x520] sm:$0xff]
  %v1065 = vld [vmem:[%s2 + $0x528] sm:$0xff]
  %v1066 = vld [vmem:[%s2 + $0x530] sm:$0xff]
  %v1067 = vld [vmem:[%s2 + $0x538] sm:$0xff]
  %v1068 = vld [vmem:[%s2 + $0x540] sm:$0xff]
  %v1069 = vld [vmem:[%s2 + $0x548] sm:$0xff]
  %v1070 = vld [vmem:[%s2 + $0x550] sm:$0xff]
  %v1071 = vld [vmem:[%s2 + $0x558] sm:$0xff]
  %v1072 = vld [vmem:[%s2 + $0x560] sm:$0xff]
  %v1073 = vld [vmem:[%s2 + $0x568] sm:$0xff]
  %v1074 = vld [vmem:[%s2 + $0x570] sm:$0xff]
  %v1075 = vld [vmem:[%s2 + $0x578] sm:$0xff]
  %v1076 = vld [vmem:[%s2 + $0x580] sm:$0xff]
  %v1077 = vld [vmem:[%s2 + $0x588] sm:$0xff]
  %v1078 = vld [vmem:[%s2 + $0x590] sm:$0xff]
  %v1079 = vld [vmem:[%s2 + $0x598] sm:$0xff]
  %v1080 = vld [vmem:[%s2 + $0x5a0] sm:$0xff]
  %v1081 = vld [vmem:[%s2 + $0x5a8] sm:$0xff]
  %v1082 = vld [vmem:[%s2 + $0x5b0] sm:$0xff]
  %v1083 = vld [vmem:[%s2 + $0x5b8] sm:$0xff]
  %v1084 = vld [vmem:[%s2 + $0x5c0] sm:$0xff]
  %v1085 = vld [vmem:[%s2 + $0x5c8] sm:$0xff]
  %v1086 = vld [vmem:[%s2 + $0x5d0] sm:$0xff]
  %v1087 = vld [vmem:[%s2 + $0x5d8] sm:$0xff]
  %v1088 = vld [vmem:[%s2 + $0x5e0] sm:$0xff]
  %v1089 = vld [vmem:[%s2 + $0x5e8] sm:$0xff]
  %v1090 = vld [vmem:[%s2 + $0x5f0] sm:$0xff]
  %v1091 = vld [vmem:[%s2 + $0x5f8] sm:$0xff]
  %v1092 = vld [vmem:[%s2 + $0x600] sm:$0xff]
  %v1093 = vld [vmem:[%s2 + $0x608] sm:$0xff]
  %v1094 = vld [vmem:[%s2 + $0x610] sm:$0xff]
  %v1095 = vld [vmem:[%s2 + $0x618] sm:$0xff]
  %v1096 = vld [vmem:[%s2 + $0x620] sm:$0xff]
  %v1097 = vld [vmem:[%s2 + $0x628] sm:$0xff]
  %v1098 = vld [vmem:[%s2 + $0x630] sm:$0xff]
  %v1099 = vld [vmem:[%s2 + $0x638] sm:$0xff]
  %v1100 = vld [vmem:[%s2 + $0x640] sm:$0xff]
  %v1101 = vld [vmem:[%s2 + $0x648] sm:$0xff]
  %v1102 = vld [vmem:[%s2 + $0x650] sm:$0xff]
  %v1103 = vld [vmem:[%s2 + $0x658] sm:$0xff]
  %v1104 = vld [vmem:[%s2 + $0x660] sm:$0xff]
  %v1105 = vld [vmem:[%s2 + $0x668] sm:$0xff]
  %v1106 = vld [vmem:[%s2 + $0x670] sm:$0xff]
  %v1107 = vld [vmem:[%s2 + $0x678] sm:$0xff]
  %v1108 = vld [vmem:[%s2 + $0x680] sm:$0xff]
  %v1109 = vld [vmem:[%s2 + $0x688] sm:$0xff]
  %v1110 = vld [vmem:[%s2 + $0x690] sm:$0xff]
  %v1111 = vld [vmem:[%s2 + $0x698] sm:$0xff]
  %v1112 = vld [vmem:[%s2 + $0x6a0] sm:$0xff]
  %v1113 = vld [vmem:[%s2 + $0x6a8] sm:$0xff]
  %v1114 = vld [vmem:[%s2 + $0x6b0] sm:$0xff]
  %v1115 = vld [vmem:[%s2 + $0x6b8] sm:$0xff]
  %v1116 = vld [vmem:[%s2 + $0x6c0] sm:$0xff]
  %v1117 = vld [vmem:[%s2 + $0x6c8] sm:$0xff]
  %v1118 = vld [vmem:[%s2 + $0x6d0] sm:$0xff]
  %v1119 = vld [vmem:[%s2 + $0x6d8] sm:$0xff]
  %v1120 = vld [vmem:[%s2 + $0x6e0] sm:$0xff]
  %v1121 = vld [vmem:[%s2 + $0x6e8] sm:$0xff]
  %v1122 = vld [vmem:[%s2 + $0x6f0] sm:$0xff]
  %v1123 = vld [vmem:[%s2 + $0x6f8] sm:$0xff]
  %1124 = vmatpush.msra.mxu0 %v930
  %1125 = vmatpush.msra.mxu0 %v928
  %1126 = vmatpush.msra.mxu0 %v926
  %1127 = vmatpush.msra.mxu0 %v924
  %1128 = vmatpush.msra.mxu0 %v922
  %1129 = vmatpush.msra.mxu0 %v920
  %1130 = vmatpush.msra.mxu0 %v918
  %1131 = vmatpush.msra.mxu0 %v916
  %1132 = vmatpush.msra.mxu0 %v914
  %1133 = vmatpush.msra.mxu0 %v912
  %1134 = vmatpush.msra.mxu0 %v910
  %1135 = vmatpush.msra.mxu0 %v908
  %1136 = vmatpush.msra.mxu0 %v906
  %1137 = vmatpush.msra.mxu0 %v904
  %1138 = vmatpush.msra.mxu0 %v902
  %1139 = vmatpush.msra.mxu0 %v900
  %1140 = vmatmul.f32.gmra.mxu0 %v834
  %v1141 = vpop.f32.mrf.mxu0
  %v1142 = vadd.f32 0.0, %v1141
  %1143 = vmatmul.f32.gmra.mxu0 %v835
  %v1144 = vpop.f32.mrf.mxu0
  %v1145 = vadd.f32 0.0, %v1144
  %1146 = vmatmul.f32.gmra.mxu0 %v836
  %v1147 = vpop.f32.mrf.mxu0
  %v1148 = vadd.f32 0.0, %v1147
  %1149 = vmatmul.f32.gmra.mxu0 %v837
  %v1150 = vpop.f32.mrf.mxu0
  %v1151 = vadd.f32 0.0, %v1150
  %1152 = vmatmul.f32.gmra.mxu0 %v838
  %v1153 = vpop.f32.mrf.mxu0
  %v1154 = vadd.f32 0.0, %v1153
  %1155 = vmatmul.f32.gmra.mxu0 %v839
  %v1156 = vpop.f32.mrf.mxu0
  %v1157 = vadd.f32 0.0, %v1156
  %1158 = vmatmul.f32.gmra.mxu0 %v840
  %v1159 = vpop.f32.mrf.mxu0
  %v1160 = vadd.f32 0.0, %v1159
  %1161 = vmatmul.f32.gmra.mxu0 %v841
  %v1162 = vpop.f32.mrf.mxu0
  %v1163 = vadd.f32 0.0, %v1162
  %1164 = vmatmul.f32.gmra.mxu0 %v842
  %v1165 = vpop.f32.mrf.mxu0
  %v1166 = vadd.f32 0.0, %v1165
  %1167 = vmatmul.f32.gmra.mxu0 %v843
  %v1168 = vpop.f32.mrf.mxu0
  %v1169 = vadd.f32 0.0, %v1168
  %1170 = vmatmul.f32.gmra.mxu0 %v844
  %v1171 = vpop.f32.mrf.mxu0
  %v1172 = vadd.f32 0.0, %v1171
  %1173 = vmatmul.f32.gmra.mxu0 %v845
  %v1174 = vpop.f32.mrf.mxu0
  %v1175 = vadd.f32 0.0, %v1174
  %1176 = vmatmul.f32.gmra.mxu0 %v846
  %v1177 = vpop.f32.mrf.mxu0
  %v1178 = vadd.f32 0.0, %v1177
  %1179 = vmatmul.f32.gmra.mxu0 %v847
  %v1180 = vpop.f32.mrf.mxu0
  %v1181 = vadd.f32 0.0, %v1180
  %1182 = vmatmul.f32.gmra.mxu0 %v848
  %v1183 = vpop.f32.mrf.mxu0
  %v1184 = vadd.f32 0.0, %v1183
  %1185 = vmatmul.f32.gmra.mxu0 %v849
  %v1186 = vpop.f32.mrf.mxu0
  %v1187 = vadd.f32 0.0, %v1186
  %1188 = vmatmul.f32.gmra.mxu0 %v850
  %v1189 = vpop.f32.mrf.mxu0
  %v1190 = vadd.f32 0.0, %v1189
  %1191 = vmatmul.f32.gmra.mxu0 %v851
  %v1192 = vpop.f32.mrf.mxu0
  %v1193 = vadd.f32 0.0, %v1192
  %1194 = vdwg.mxu0
  %1195 = vmatpush.msra.mxu0 %v962
  %1196 = vmatpush.msra.mxu0 %v960
  %1197 = vmatpush.msra.mxu0 %v958
  %1198 = vmatpush.msra.mxu0 %v956
  %1199 = vmatpush.msra.mxu0 %v954
  %1200 = vmatpush.msra.mxu0 %v952
  %1201 = vmatpush.msra.mxu0 %v950
  %1202 = vmatpush.msra.mxu0 %v948
  %1203 = vmatpush.msra.mxu0 %v946
  %1204 = vmatpush.msra.mxu0 %v944
  %1205 = vmatpush.msra.mxu0 %v942
  %1206 = vmatpush.msra.mxu0 %v940
  %1207 = vmatpush.msra.mxu0 %v938
  %1208 = vmatpush.msra.mxu0 %v936
  %1209 = vmatpush.msra.mxu0 %v934
  %1210 = vmatpush.msra.mxu0 %v932
  %1211 = vmatmul.f32.gmra.mxu0 %v852
  %v1212 = vpop.f32.mrf.mxu0
  %v1213 = vadd.f32 %v1142, %v1212
  %1214 = vmatmul.f32.gmra.mxu0 %v853
  %v1215 = vpop.f32.mrf.mxu0
  %v1216 = vadd.f32 %v1145, %v1215
  %1217 = vmatmul.f32.gmra.mxu0 %v854
  %v1218 = vpop.f32.mrf.mxu0
  %v1219 = vadd.f32 %v1148, %v1218
  %1220 = vmatmul.f32.gmra.mxu0 %v855
  %v1221 = vpop.f32.mrf.mxu0
  %v1222 = vadd.f32 %v1151, %v1221
  %1223 = vmatmul.f32.gmra.mxu0 %v856
  %v1224 = vpop.f32.mrf.mxu0
  %v1225 = vadd.f32 %v1154, %v1224
  %1226 = vmatmul.f32.gmra.mxu0 %v857
  %v1227 = vpop.f32.mrf.mxu0
  %v1228 = vadd.f32 %v1157, %v1227
  %1229 = vmatmul.f32.gmra.mxu0 %v858
  %v1230 = vpop.f32.mrf.mxu0
  %v1231 = vadd.f32 %v1160, %v1230
  %1232 = vmatmul.f32.gmra.mxu0 %v859
  %v1233 = vpop.f32.mrf.mxu0
  %v1234 = vadd.f32 %v1163, %v1233
  %1235 = vmatmul.f32.gmra.mxu0 %v860
  %v1236 = vpop.f32.mrf.mxu0
  %v1237 = vadd.f32 %v1166, %v1236
  %1238 = vmatmul.f32.gmra.mxu0 %v861
  %v1239 = vpop.f32.mrf.mxu0
  %v1240 = vadd.f32 %v1169, %v1239
  %1241 = vmatmul.f32.gmra.mxu0 %v862
  %v1242 = vpop.f32.mrf.mxu0
  %v1243 = vadd.f32 %v1172, %v1242
  %1244 = vmatmul.f32.gmra.mxu0 %v863
  %v1245 = vpop.f32.mrf.mxu0
  %v1246 = vadd.f32 %v1175, %v1245
  %1247 = vmatmul.f32.gmra.mxu0 %v864
  %v1248 = vpop.f32.mrf.mxu0
  %v1249 = vadd.f32 %v1178, %v1248
  %1250 = vmatmul.f32.gmra.mxu0 %v865
  %v1251 = vpop.f32.mrf.mxu0
  %v1252 = vadd.f32 %v1181, %v1251
  %1253 = vmatmul.f32.gmra.mxu0 %v866
  %v1254 = vpop.f32.mrf.mxu0
  %v1255 = vadd.f32 %v1184, %v1254
  %1256 = vmatmul.f32.gmra.mxu0 %v867
  %v1257 = vpop.f32.mrf.mxu0
  %v1258 = vadd.f32 %v1187, %v1257
  %1259 = vmatmul.f32.gmra.mxu0 %v868
  %v1260 = vpop.f32.mrf.mxu0
  %v1261 = vadd.f32 %v1190, %v1260
  %1262 = vmatmul.f32.gmra.mxu0 %v869
  %v1263 = vpop.f32.mrf.mxu0
  %v1264 = vadd.f32 %v1193, %v1263
  %1265 = vdwg.mxu0
  %1266 = vmatpush.msra.mxu0 %v994
  %1267 = vmatpush.msra.mxu0 %v992
  %1268 = vmatpush.msra.mxu0 %v990
  %1269 = vmatpush.msra.mxu0 %v988
  %1270 = vmatpush.msra.mxu0 %v986
  %1271 = vmatpush.msra.mxu0 %v984
  %1272 = vmatpush.msra.mxu0 %v982
  %1273 = vmatpush.msra.mxu0 %v980
  %1274 = vmatpush.msra.mxu0 %v978
  %1275 = vmatpush.msra.mxu0 %v976
  %1276 = vmatpush.msra.mxu0 %v974
  %1277 = vmatpush.msra.mxu0 %v972
  %1278 = vmatpush.msra.mxu0 %v970
  %1279 = vmatpush.msra.mxu0 %v968
  %1280 = vmatpush.msra.mxu0 %v966
  %1281 = vmatpush.msra.mxu0 %v964
  %1282 = vmatmul.f32.gmra.mxu0 %v837
  %v1283 = vpop.f32.mrf.mxu0
  %v1284 = vadd.f32 %v1213, %v1283
  %1285 = vmatmul.f32.gmra.mxu0 %v838
  %v1286 = vpop.f32.mrf.mxu0
  %v1287 = vadd.f32 %v1216, %v1286
  %1288 = vmatmul.f32.gmra.mxu0 %v839
  %v1289 = vpop.f32.mrf.mxu0
  %v1290 = vadd.f32 %v1219, %v1289
  %1291 = vmatmul.f32.gmra.mxu0 %v840
  %v1292 = vpop.f32.mrf.mxu0
  %v1293 = vadd.f32 %v1222, %v1292
  %1294 = vmatmul.f32.gmra.mxu0 %v841
  %v1295 = vpop.f32.mrf.mxu0
  %v1296 = vadd.f32 %v1225, %v1295
  %1297 = vmatmul.f32.gmra.mxu0 %v842
  %v1298 = vpop.f32.mrf.mxu0
  %v1299 = vadd.f32 %v1228, %v1298
  %1300 = vmatmul.f32.gmra.mxu0 %v843
  %v1301 = vpop.f32.mrf.mxu0
  %v1302 = vadd.f32 %v1231, %v1301
  %1303 = vmatmul.f32.gmra.mxu0 %v844
  %v1304 = vpop.f32.mrf.mxu0
  %v1305 = vadd.f32 %v1234, %v1304
  %1306 = vmatmul.f32.gmra.mxu0 %v845
  %v1307 = vpop.f32.mrf.mxu0
  %v1308 = vadd.f32 %v1237, %v1307
  %1309 = vmatmul.f32.gmra.mxu0 %v846
  %v1310 = vpop.f32.mrf.mxu0
  %v1311 = vadd.f32 %v1240, %v1310
  %1312 = vmatmul.f32.gmra.mxu0 %v847
  %v1313 = vpop.f32.mrf.mxu0
  %v1314 = vadd.f32 %v1243, %v1313
  %1315 = vmatmul.f32.gmra.mxu0 %v848
  %v1316 = vpop.f32.mrf.mxu0
  %v1317 = vadd.f32 %v1246, %v1316
  %1318 = vmatmul.f32.gmra.mxu0 %v849
  %v1319 = vpop.f32.mrf.mxu0
  %v1320 = vadd.f32 %v1249, %v1319
  %1321 = vmatmul.f32.gmra.mxu0 %v850
  %v1322 = vpop.f32.mrf.mxu0
  %v1323 = vadd.f32 %v1252, %v1322
  %1324 = vmatmul.f32.gmra.mxu0 %v851
  %v1325 = vpop.f32.mrf.mxu0
  %v1326 = vadd.f32 %v1255, %v1325
  %1327 = vmatmul.f32.gmra.mxu0 %v870
  %v1328 = vpop.f32.mrf.mxu0
  %v1329 = vadd.f32 %v1258, %v1328
  %1330 = vmatmul.f32.gmra.mxu0 %v871
  %v1331 = vpop.f32.mrf.mxu0
  %v1332 = vadd.f32 %v1261, %v1331
  %1333 = vmatmul.f32.gmra.mxu0 %v872
  %v1334 = vpop.f32.mrf.mxu0
  %v1335 = vadd.f32 %v1264, %v1334
  %1336 = vdwg.mxu0
  %1337 = vmatpush.msra.mxu0 %v1026
  %1338 = vmatpush.msra.mxu0 %v1024
  %1339 = vmatpush.msra.mxu0 %v1022
  %1340 = vmatpush.msra.mxu0 %v1020
  %1341 = vmatpush.msra.mxu0 %v1018
  %1342 = vmatpush.msra.mxu0 %v1016
  %1343 = vmatpush.msra.mxu0 %v1014
  %1344 = vmatpush.msra.mxu0 %v1012
  %1345 = vmatpush.msra.mxu0 %v1010
  %1346 = vmatpush.msra.mxu0 %v1008
  %1347 = vmatpush.msra.mxu0 %v1006
  %1348 = vmatpush.msra.mxu0 %v1004
  %1349 = vmatpush.msra.mxu0 %v1002
  %1350 = vmatpush.msra.mxu0 %v1000
  %1351 = vmatpush.msra.mxu0 %v998
  %1352 = vmatpush.msra.mxu0 %v996
  %1353 = vmatmul.f32.gmra.mxu0 %v855
  %v1354 = vpop.f32.mrf.mxu0
  %v1355 = vadd.f32 %v1284, %v1354
  %1356 = vmatmul.f32.gmra.mxu0 %v856
  %v1357 = vpop.f32.mrf.mxu0
  %v1358 = vadd.f32 %v1287, %v1357
  %1359 = vmatmul.f32.gmra.mxu0 %v857
  %v1360 = vpop.f32.mrf.mxu0
  %v1361 = vadd.f32 %v1290, %v1360
  %1362 = vmatmul.f32.gmra.mxu0 %v858
  %v1363 = vpop.f32.mrf.mxu0
  %v1364 = vadd.f32 %v1293, %v1363
  %1365 = vmatmul.f32.gmra.mxu0 %v859
  %v1366 = vpop.f32.mrf.mxu0
  %v1367 = vadd.f32 %v1296, %v1366
  %1368 = vmatmul.f32.gmra.mxu0 %v860
  %v1369 = vpop.f32.mrf.mxu0
  %v1370 = vadd.f32 %v1299, %v1369
  %1371 = vmatmul.f32.gmra.mxu0 %v861
  %v1372 = vpop.f32.mrf.mxu0
  %v1373 = vadd.f32 %v1302, %v1372
  %1374 = vmatmul.f32.gmra.mxu0 %v862
  %v1375 = vpop.f32.mrf.mxu0
  %v1376 = vadd.f32 %v1305, %v1375
  %1377 = vmatmul.f32.gmra.mxu0 %v863
  %v1378 = vpop.f32.mrf.mxu0
  %v1379 = vadd.f32 %v1308, %v1378
  %1380 = vmatmul.f32.gmra.mxu0 %v864
  %v1381 = vpop.f32.mrf.mxu0
  %v1382 = vadd.f32 %v1311, %v1381
  %1383 = vmatmul.f32.gmra.mxu0 %v865
  %v1384 = vpop.f32.mrf.mxu0
  %v1385 = vadd.f32 %v1314, %v1384
  %1386 = vmatmul.f32.gmra.mxu0 %v866
  %v1387 = vpop.f32.mrf.mxu0
  %v1388 = vadd.f32 %v1317, %v1387
  %1389 = vmatmul.f32.gmra.mxu0 %v867
  %v1390 = vpop.f32.mrf.mxu0
  %v1391 = vadd.f32 %v1320, %v1390
  %1392 = vmatmul.f32.gmra.mxu0 %v868
  %v1393 = vpop.f32.mrf.mxu0
  %v1394 = vadd.f32 %v1323, %v1393
  %1395 = vmatmul.f32.gmra.mxu0 %v869
  %v1396 = vpop.f32.mrf.mxu0
  %v1397 = vadd.f32 %v1326, %v1396
  %1398 = vmatmul.f32.gmra.mxu0 %v873
  %v1399 = vpop.f32.mrf.mxu0
  %v1400 = vadd.f32 %v1329, %v1399
  %1401 = vmatmul.f32.gmra.mxu0 %v874
  %v1402 = vpop.f32.mrf.mxu0
  %v1403 = vadd.f32 %v1332, %v1402
  %1404 = vmatmul.f32.gmra.mxu0 %v875
  %v1405 = vpop.f32.mrf.mxu0
  %v1406 = vadd.f32 %v1335, %v1405
  %1407 = vdwg.mxu0
  %1408 = vmatpush.msra.mxu0 %v1058
  %1409 = vmatpush.msra.mxu0 %v1056
  %1410 = vmatpush.msra.mxu0 %v1054
  %1411 = vmatpush.msra.mxu0 %v1052
  %1412 = vmatpush.msra.mxu0 %v1050
  %1413 = vmatpush.msra.mxu0 %v1048
  %1414 = vmatpush.msra.mxu0 %v1046
  %1415 = vmatpush.msra.mxu0 %v1044
  %1416 = vmatpush.msra.mxu0 %v1042
  %1417 = vmatpush.msra.mxu0 %v1040
  %1418 = vmatpush.msra.mxu0 %v1038
  %1419 = vmatpush.msra.mxu0 %v1036
  %1420 = vmatpush.msra.mxu0 %v1034
  %1421 = vmatpush.msra.mxu0 %v1032
  %1422 = vmatpush.msra.mxu0 %v1030
  %1423 = vmatpush.msra.mxu0 %v1028
  %1424 = vmatmul.f32.gmra.mxu0 %v840
  %v1425 = vpop.f32.mrf.mxu0
  %v1426 = vadd.f32 %v1355, %v1425
  %1427 = vmatmul.f32.gmra.mxu0 %v841
  %v1428 = vpop.f32.mrf.mxu0
  %v1429 = vadd.f32 %v1358, %v1428
  %1430 = vmatmul.f32.gmra.mxu0 %v842
  %v1431 = vpop.f32.mrf.mxu0
  %v1432 = vadd.f32 %v1361, %v1431
  %1433 = vmatmul.f32.gmra.mxu0 %v843
  %v1434 = vpop.f32.mrf.mxu0
  %v1435 = vadd.f32 %v1364, %v1434
  %1436 = vmatmul.f32.gmra.mxu0 %v844
  %v1437 = vpop.f32.mrf.mxu0
  %v1438 = vadd.f32 %v1367, %v1437
  %1439 = vmatmul.f32.gmra.mxu0 %v845
  %v1440 = vpop.f32.mrf.mxu0
  %v1441 = vadd.f32 %v1370, %v1440
  %1442 = vmatmul.f32.gmra.mxu0 %v846
  %v1443 = vpop.f32.mrf.mxu0
  %v1444 = vadd.f32 %v1373, %v1443
  %1445 = vmatmul.f32.gmra.mxu0 %v847
  %v1446 = vpop.f32.mrf.mxu0
  %v1447 = vadd.f32 %v1376, %v1446
  %1448 = vmatmul.f32.gmra.mxu0 %v848
  %v1449 = vpop.f32.mrf.mxu0
  %v1450 = vadd.f32 %v1379, %v1449
  %1451 = vmatmul.f32.gmra.mxu0 %v849
  %v1452 = vpop.f32.mrf.mxu0
  %v1453 = vadd.f32 %v1382, %v1452
  %1454 = vmatmul.f32.gmra.mxu0 %v850
  %v1455 = vpop.f32.mrf.mxu0
  %v1456 = vadd.f32 %v1385, %v1455
  %1457 = vmatmul.f32.gmra.mxu0 %v851
  %v1458 = vpop.f32.mrf.mxu0
  %v1459 = vadd.f32 %v1388, %v1458
  %1460 = vmatmul.f32.gmra.mxu0 %v870
  %v1461 = vpop.f32.mrf.mxu0
  %v1462 = vadd.f32 %v1391, %v1461
  %1463 = vmatmul.f32.gmra.mxu0 %v871
  %v1464 = vpop.f32.mrf.mxu0
  %v1465 = vadd.f32 %v1394, %v1464
  %1466 = vmatmul.f32.gmra.mxu0 %v872
  %v1467 = vpop.f32.mrf.mxu0
  %v1468 = vadd.f32 %v1397, %v1467
  %1469 = vmatmul.f32.gmra.mxu0 %v876
  %v1470 = vpop.f32.mrf.mxu0
  %v1471 = vadd.f32 %v1400, %v1470
  %1472 = vmatmul.f32.gmra.mxu0 %v877
  %v1473 = vpop.f32.mrf.mxu0
  %v1474 = vadd.f32 %v1403, %v1473
  %1475 = vmatmul.f32.gmra.mxu0 %v878
  %v1476 = vpop.f32.mrf.mxu0
  %v1477 = vadd.f32 %v1406, %v1476
  %1478 = vdwg.mxu0
  %1479 = vmatpush.msra.mxu0 %v1090
  %1480 = vmatpush.msra.mxu0 %v1088
  %1481 = vmatpush.msra.mxu0 %v1086
  %1482 = vmatpush.msra.mxu0 %v1084
  %1483 = vmatpush.msra.mxu0 %v1082
  %1484 = vmatpush.msra.mxu0 %v1080
  %1485 = vmatpush.msra.mxu0 %v1078
  %1486 = vmatpush.msra.mxu0 %v1076
  %1487 = vmatpush.msra.mxu0 %v1074
  %1488 = vmatpush.msra.mxu0 %v1072
  %1489 = vmatpush.msra.mxu0 %v1070
  %1490 = vmatpush.msra.mxu0 %v1068
  %1491 = vmatpush.msra.mxu0 %v1066
  %1492 = vmatpush.msra.mxu0 %v1064
  %1493 = vmatpush.msra.mxu0 %v1062
  %1494 = vmatpush.msra.mxu0 %v1060
  %1495 = vmatmul.f32.gmra.mxu0 %v858
  %v1496 = vpop.f32.mrf.mxu0
  %v1497 = vadd.f32 %v1426, %v1496
  %1498 = vmatmul.f32.gmra.mxu0 %v859
  %v1499 = vpop.f32.mrf.mxu0
  %v1500 = vadd.f32 %v1429, %v1499
  %1501 = vmatmul.f32.gmra.mxu0 %v860
  %v1502 = vpop.f32.mrf.mxu0
  %v1503 = vadd.f32 %v1432, %v1502
  %1504 = vmatmul.f32.gmra.mxu0 %v861
  %v1505 = vpop.f32.mrf.mxu0
  %v1506 = vadd.f32 %v1435, %v1505
  %1507 = vmatmul.f32.gmra.mxu0 %v862
  %v1508 = vpop.f32.mrf.mxu0
  %v1509 = vadd.f32 %v1438, %v1508
  %1510 = vmatmul.f32.gmra.mxu0 %v863
  %v1511 = vpop.f32.mrf.mxu0
  %v1512 = vadd.f32 %v1441, %v1511
  %1513 = vmatmul.f32.gmra.mxu0 %v864
  %v1514 = vpop.f32.mrf.mxu0
  %v1515 = vadd.f32 %v1444, %v1514
  %1516 = vmatmul.f32.gmra.mxu0 %v865
  %v1517 = vpop.f32.mrf.mxu0
  %v1518 = vadd.f32 %v1447, %v1517
  %1519 = vmatmul.f32.gmra.mxu0 %v866
  %v1520 = vpop.f32.mrf.mxu0
  %v1521 = vadd.f32 %v1450, %v1520
  %1522 = vmatmul.f32.gmra.mxu0 %v867
  %v1523 = vpop.f32.mrf.mxu0
  %v1524 = vadd.f32 %v1453, %v1523
  %1525 = vmatmul.f32.gmra.mxu0 %v868
  %v1526 = vpop.f32.mrf.mxu0
  %v1527 = vadd.f32 %v1456, %v1526
  %1528 = vmatmul.f32.gmra.mxu0 %v869
  %v1529 = vpop.f32.mrf.mxu0
  %v1530 = vadd.f32 %v1459, %v1529
  %1531 = vmatmul.f32.gmra.mxu0 %v873
  %v1532 = vpop.f32.mrf.mxu0
  %v1533 = vadd.f32 %v1462, %v1532
  %1534 = vmatmul.f32.gmra.mxu0 %v874
  %v1535 = vpop.f32.mrf.mxu0
  %v1536 = vadd.f32 %v1465, %v1535
  %1537 = vmatmul.f32.gmra.mxu0 %v875
  %v1538 = vpop.f32.mrf.mxu0
  %v1539 = vadd.f32 %v1468, %v1538
  %1540 = vmatmul.f32.gmra.mxu0 %v879
  %v1541 = vpop.f32.mrf.mxu0
  %v1542 = vadd.f32 %v1471, %v1541
  %1543 = vmatmul.f32.gmra.mxu0 %v880
  %v1544 = vpop.f32.mrf.mxu0
  %v1545 = vadd.f32 %v1474, %v1544
  %1546 = vmatmul.f32.gmra.mxu0 %v881
  %v1547 = vpop.f32.mrf.mxu0
  %v1548 = vadd.f32 %v1477, %v1547
  %1549 = vdwg.mxu0
  %1550 = vmatpush.msra.mxu0 %v1122
  %1551 = vmatpush.msra.mxu0 %v1120
  %1552 = vmatpush.msra.mxu0 %v1118
  %1553 = vmatpush.msra.mxu0 %v1116
  %1554 = vmatpush.msra.mxu0 %v1114
  %1555 = vmatpush.msra.mxu0 %v1112
  %1556 = vmatpush.msra.mxu0 %v1110
  %1557 = vmatpush.msra.mxu0 %v1108
  %1558 = vmatpush.msra.mxu0 %v1106
  %1559 = vmatpush.msra.mxu0 %v1104
  %1560 = vmatpush.msra.mxu0 %v1102
  %1561 = vmatpush.msra.mxu0 %v1100
  %1562 = vmatpush.msra.mxu0 %v1098
  %1563 = vmatpush.msra.mxu0 %v1096
  %1564 = vmatpush.msra.mxu0 %v1094
  %1565 = vmatpush.msra.mxu0 %v1092
  %1566 = vmatmul.f32.gmra.mxu0 %v882
  %v1567 = vpop.f32.mrf.mxu0
  %v1568 = vadd.f32 %v1497, %v1567
  %1569 = vmatmul.f32.gmra.mxu0 %v883
  %v1570 = vpop.f32.mrf.mxu0
  %v1571 = vadd.f32 %v1500, %v1570
  %1572 = vmatmul.f32.gmra.mxu0 %v884
  %v1573 = vpop.f32.mrf.mxu0
  %v1574 = vadd.f32 %v1503, %v1573
  %1575 = vmatmul.f32.gmra.mxu0 %v885
  %v1576 = vpop.f32.mrf.mxu0
  %v1577 = vadd.f32 %v1506, %v1576
  %1578 = vmatmul.f32.gmra.mxu0 %v886
  %v1579 = vpop.f32.mrf.mxu0
  %v1580 = vadd.f32 %v1509, %v1579
  %1581 = vmatmul.f32.gmra.mxu0 %v887
  %v1582 = vpop.f32.mrf.mxu0
  %v1583 = vadd.f32 %v1512, %v1582
  %1584 = vmatmul.f32.gmra.mxu0 %v888
  %v1585 = vpop.f32.mrf.mxu0
  %v1586 = vadd.f32 %v1515, %v1585
  %1587 = vmatmul.f32.gmra.mxu0 %v889
  %v1588 = vpop.f32.mrf.mxu0
  %v1589 = vadd.f32 %v1518, %v1588
  %1590 = vmatmul.f32.gmra.mxu0 %v890
  %v1591 = vpop.f32.mrf.mxu0
  %v1592 = vadd.f32 %v1521, %v1591
  %1593 = vmatmul.f32.gmra.mxu0 %v891
  %v1594 = vpop.f32.mrf.mxu0
  %v1595 = vadd.f32 %v1524, %v1594
  %1596 = vmatmul.f32.gmra.mxu0 %v892
  %v1597 = vpop.f32.mrf.mxu0
  %v1598 = vadd.f32 %v1527, %v1597
  %1599 = vmatmul.f32.gmra.mxu0 %v893
  %v1600 = vpop.f32.mrf.mxu0
  %v1601 = vadd.f32 %v1530, %v1600
  %1602 = vmatmul.f32.gmra.mxu0 %v894
  %v1603 = vpop.f32.mrf.mxu0
  %v1604 = vadd.f32 %v1533, %v1603
  %1605 = vmatmul.f32.gmra.mxu0 %v895
  %v1606 = vpop.f32.mrf.mxu0
  %v1607 = vadd.f32 %v1536, %v1606
  %1608 = vmatmul.f32.gmra.mxu0 %v896
  %v1609 = vpop.f32.mrf.mxu0
  %v1610 = vadd.f32 %v1539, %v1609
  %1611 = vmatmul.f32.gmra.mxu0 %v897
  %v1612 = vpop.f32.mrf.mxu0
  %v1613 = vadd.f32 %v1542, %v1612
  %1614 = vmatmul.f32.gmra.mxu0 %v898
  %v1615 = vpop.f32.mrf.mxu0
  %v1616 = vadd.f32 %v1545, %v1615
  %1617 = vmatmul.f32.gmra.mxu0 %v899
  %v1618 = vpop.f32.mrf.mxu0
  %v1619 = vadd.f32 %v1548, %v1618
  %1620 = vdwg.mxu0
  %1621 = vmatpush.msra.mxu0 %v931
  %1622 = vmatpush.msra.mxu0 %v929
  %1623 = vmatpush.msra.mxu0 %v927
  %1624 = vmatpush.msra.mxu0 %v925
  %1625 = vmatpush.msra.mxu0 %v923
  %1626 = vmatpush.msra.mxu0 %v921
  %1627 = vmatpush.msra.mxu0 %v919
  %1628 = vmatpush.msra.mxu0 %v917
  %1629 = vmatpush.msra.mxu0 %v915
  %1630 = vmatpush.msra.mxu0 %v913
  %1631 = vmatpush.msra.mxu0 %v911
  %1632 = vmatpush.msra.mxu0 %v909
  %1633 = vmatpush.msra.mxu0 %v907
  %1634 = vmatpush.msra.mxu0 %v905
  %1635 = vmatpush.msra.mxu0 %v903
  %1636 = vmatpush.msra.mxu0 %v901
  %1637 = vmatmul.f32.gmra.mxu0 %v834
  %v1638 = vpop.f32.mrf.mxu0
  %v1639 = vadd.f32 0.0, %v1638
  %1640 = vmatmul.f32.gmra.mxu0 %v835
  %v1641 = vpop.f32.mrf.mxu0
  %v1642 = vadd.f32 0.0, %v1641
  %1643 = vmatmul.f32.gmra.mxu0 %v836
  %v1644 = vpop.f32.mrf.mxu0
  %v1645 = vadd.f32 0.0, %v1644
  %1646 = vmatmul.f32.gmra.mxu0 %v837
  %v1647 = vpop.f32.mrf.mxu0
  %v1648 = vadd.f32 0.0, %v1647
  %1649 = vmatmul.f32.gmra.mxu0 %v838
  %v1650 = vpop.f32.mrf.mxu0
  %v1651 = vadd.f32 0.0, %v1650
  %1652 = vmatmul.f32.gmra.mxu0 %v839
  %v1653 = vpop.f32.mrf.mxu0
  %v1654 = vadd.f32 0.0, %v1653
  %1655 = vmatmul.f32.gmra.mxu0 %v840
  %v1656 = vpop.f32.mrf.mxu0
  %v1657 = vadd.f32 0.0, %v1656
  %1658 = vmatmul.f32.gmra.mxu0 %v841
  %v1659 = vpop.f32.mrf.mxu0
  %v1660 = vadd.f32 0.0, %v1659
  %1661 = vmatmul.f32.gmra.mxu0 %v842
  %v1662 = vpop.f32.mrf.mxu0
  %v1663 = vadd.f32 0.0, %v1662
  %1664 = vmatmul.f32.gmra.mxu0 %v843
  %v1665 = vpop.f32.mrf.mxu0
  %v1666 = vadd.f32 0.0, %v1665
  %1667 = vmatmul.f32.gmra.mxu0 %v844
  %v1668 = vpop.f32.mrf.mxu0
  %v1669 = vadd.f32 0.0, %v1668
  %1670 = vmatmul.f32.gmra.mxu0 %v845
  %v1671 = vpop.f32.mrf.mxu0
  %v1672 = vadd.f32 0.0, %v1671
  %1673 = vmatmul.f32.gmra.mxu0 %v846
  %v1674 = vpop.f32.mrf.mxu0
  %v1675 = vadd.f32 0.0, %v1674
  %1676 = vmatmul.f32.gmra.mxu0 %v847
  %v1677 = vpop.f32.mrf.mxu0
  %v1678 = vadd.f32 0.0, %v1677
  %1679 = vmatmul.f32.gmra.mxu0 %v848
  %v1680 = vpop.f32.mrf.mxu0
  %v1681 = vadd.f32 0.0, %v1680
  %1682 = vmatmul.f32.gmra.mxu0 %v849
  %v1683 = vpop.f32.mrf.mxu0
  %v1684 = vadd.f32 0.0, %v1683
  %1685 = vmatmul.f32.gmra.mxu0 %v850
  %v1686 = vpop.f32.mrf.mxu0
  %v1687 = vadd.f32 0.0, %v1686
  %1688 = vmatmul.f32.gmra.mxu0 %v851
  %v1689 = vpop.f32.mrf.mxu0
  %v1690 = vadd.f32 0.0, %v1689
  %1691 = vdwg.mxu0
  %1692 = vmatpush.msra.mxu0 %v963
  %1693 = vmatpush.msra.mxu0 %v961
  %1694 = vmatpush.msra.mxu0 %v959
  %1695 = vmatpush.msra.mxu0 %v957
  %1696 = vmatpush.msra.mxu0 %v955
  %1697 = vmatpush.msra.mxu0 %v953
  %1698 = vmatpush.msra.mxu0 %v951
  %1699 = vmatpush.msra.mxu0 %v949
  %1700 = vmatpush.msra.mxu0 %v947
  %1701 = vmatpush.msra.mxu0 %v945
  %1702 = vmatpush.msra.mxu0 %v943
  %1703 = vmatpush.msra.mxu0 %v941
  %1704 = vmatpush.msra.mxu0 %v939
  %1705 = vmatpush.msra.mxu0 %v937
  %1706 = vmatpush.msra.mxu0 %v935
  %1707 = vmatpush.msra.mxu0 %v933
  %1708 = vmatmul.f32.gmra.mxu0 %v852
  %v1709 = vpop.f32.mrf.mxu0
  %v1710 = vadd.f32 %v1639, %v1709
  %1711 = vmatmul.f32.gmra.mxu0 %v853
  %v1712 = vpop.f32.mrf.mxu0
  %v1713 = vadd.f32 %v1642, %v1712
  %1714 = vmatmul.f32.gmra.mxu0 %v854
  %v1715 = vpop.f32.mrf.mxu0
  %v1716 = vadd.f32 %v1645, %v1715
  %1717 = vmatmul.f32.gmra.mxu0 %v855
  %v1718 = vpop.f32.mrf.mxu0
  %v1719 = vadd.f32 %v1648, %v1718
  %1720 = vmatmul.f32.gmra.mxu0 %v856
  %v1721 = vpop.f32.mrf.mxu0
  %v1722 = vadd.f32 %v1651, %v1721
  %1723 = vmatmul.f32.gmra.mxu0 %v857
  %v1724 = vpop.f32.mrf.mxu0
  %v1725 = vadd.f32 %v1654, %v1724
  %1726 = vmatmul.f32.gmra.mxu0 %v858
  %v1727 = vpop.f32.mrf.mxu0
  %v1728 = vadd.f32 %v1657, %v1727
  %1729 = vmatmul.f32.gmra.mxu0 %v859
  %v1730 = vpop.f32.mrf.mxu0
  %v1731 = vadd.f32 %v1660, %v1730
  %1732 = vmatmul.f32.gmra.mxu0 %v860
  %v1733 = vpop.f32.mrf.mxu0
  %v1734 = vadd.f32 %v1663, %v1733
  %1735 = vmatmul.f32.gmra.mxu0 %v861
  %v1736 = vpop.f32.mrf.mxu0
  %v1737 = vadd.f32 %v1666, %v1736
  %1738 = vmatmul.f32.gmra.mxu0 %v862
  %v1739 = vpop.f32.mrf.mxu0
  %v1740 = vadd.f32 %v1669, %v1739
  %1741 = vmatmul.f32.gmra.mxu0 %v863
  %v1742 = vpop.f32.mrf.mxu0
  %v1743 = vadd.f32 %v1672, %v1742
  %1744 = vmatmul.f32.gmra.mxu0 %v864
  %v1745 = vpop.f32.mrf.mxu0
  %v1746 = vadd.f32 %v1675, %v1745
  %1747 = vmatmul.f32.gmra.mxu0 %v865
  %v1748 = vpop.f32.mrf.mxu0
  %v1749 = vadd.f32 %v1678, %v1748
  %1750 = vmatmul.f32.gmra.mxu0 %v866
  %v1751 = vpop.f32.mrf.mxu0
  %v1752 = vadd.f32 %v1681, %v1751
  %1753 = vmatmul.f32.gmra.mxu0 %v867
  %v1754 = vpop.f32.mrf.mxu0
  %v1755 = vadd.f32 %v1684, %v1754
  %1756 = vmatmul.f32.gmra.mxu0 %v868
  %v1757 = vpop.f32.mrf.mxu0
  %v1758 = vadd.f32 %v1687, %v1757
  %1759 = vmatmul.f32.gmra.mxu0 %v869
  %v1760 = vpop.f32.mrf.mxu0
  %v1761 = vadd.f32 %v1690, %v1760
  %1762 = vdwg.mxu0
  %1763 = vmatpush.msra.mxu0 %v995
  %1764 = vmatpush.msra.mxu0 %v993
  %1765 = vmatpush.msra.mxu0 %v991
  %1766 = vmatpush.msra.mxu0 %v989
  %1767 = vmatpush.msra.mxu0 %v987
  %1768 = vmatpush.msra.mxu0 %v985
  %1769 = vmatpush.msra.mxu0 %v983
  %1770 = vmatpush.msra.mxu0 %v981
  %1771 = vmatpush.msra.mxu0 %v979
  %1772 = vmatpush.msra.mxu0 %v977
  %1773 = vmatpush.msra.mxu0 %v975
  %1774 = vmatpush.msra.mxu0 %v973
  %1775 = vmatpush.msra.mxu0 %v971
  %1776 = vmatpush.msra.mxu0 %v969
  %1777 = vmatpush.msra.mxu0 %v967
  %1778 = vmatpush.msra.mxu0 %v965
  %1779 = vmatmul.f32.gmra.mxu0 %v837
  %v1780 = vpop.f32.mrf.mxu0
  %v1781 = vadd.f32 %v1710, %v1780
  %1782 = vmatmul.f32.gmra.mxu0 %v838
  %v1783 = vpop.f32.mrf.mxu0
  %v1784 = vadd.f32 %v1713, %v1783
  %1785 = vmatmul.f32.gmra.mxu0 %v839
  %v1786 = vpop.f32.mrf.mxu0
  %v1787 = vadd.f32 %v1716, %v1786
  %1788 = vmatmul.f32.gmra.mxu0 %v840
  %v1789 = vpop.f32.mrf.mxu0
  %v1790 = vadd.f32 %v1719, %v1789
  %1791 = vmatmul.f32.gmra.mxu0 %v841
  %v1792 = vpop.f32.mrf.mxu0
  %v1793 = vadd.f32 %v1722, %v1792
  %1794 = vmatmul.f32.gmra.mxu0 %v842
  %v1795 = vpop.f32.mrf.mxu0
  %v1796 = vadd.f32 %v1725, %v1795
  %1797 = vmatmul.f32.gmra.mxu0 %v843
  %v1798 = vpop.f32.mrf.mxu0
  %v1799 = vadd.f32 %v1728, %v1798
  %1800 = vmatmul.f32.gmra.mxu0 %v844
  %v1801 = vpop.f32.mrf.mxu0
  %v1802 = vadd.f32 %v1731, %v1801
  %1803 = vmatmul.f32.gmra.mxu0 %v845
  %v1804 = vpop.f32.mrf.mxu0
  %v1805 = vadd.f32 %v1734, %v1804
  %1806 = vmatmul.f32.gmra.mxu0 %v846
  %v1807 = vpop.f32.mrf.mxu0
  %v1808 = vadd.f32 %v1737, %v1807
  %1809 = vmatmul.f32.gmra.mxu0 %v847
  %v1810 = vpop.f32.mrf.mxu0
  %v1811 = vadd.f32 %v1740, %v1810
  %1812 = vmatmul.f32.gmra.mxu0 %v848
  %v1813 = vpop.f32.mrf.mxu0
  %v1814 = vadd.f32 %v1743, %v1813
  %1815 = vmatmul.f32.gmra.mxu0 %v849
  %v1816 = vpop.f32.mrf.mxu0
  %v1817 = vadd.f32 %v1746, %v1816
  %1818 = vmatmul.f32.gmra.mxu0 %v850
  %v1819 = vpop.f32.mrf.mxu0
  %v1820 = vadd.f32 %v1749, %v1819
  %1821 = vmatmul.f32.gmra.mxu0 %v851
  %v1822 = vpop.f32.mrf.mxu0
  %v1823 = vadd.f32 %v1752, %v1822
  %1824 = vmatmul.f32.gmra.mxu0 %v870
  %v1825 = vpop.f32.mrf.mxu0
  %v1826 = vadd.f32 %v1755, %v1825
  %1827 = vmatmul.f32.gmra.mxu0 %v871
  %v1828 = vpop.f32.mrf.mxu0
  %v1829 = vadd.f32 %v1758, %v1828
  %1830 = vmatmul.f32.gmra.mxu0 %v872
  %v1831 = vpop.f32.mrf.mxu0
  %v1832 = vadd.f32 %v1761, %v1831
  %1833 = vdwg.mxu0
  %1834 = vmatpush.msra.mxu0 %v1027
  %1835 = vmatpush.msra.mxu0 %v1025
  %1836 = vmatpush.msra.mxu0 %v1023
  %1837 = vmatpush.msra.mxu0 %v1021
  %1838 = vmatpush.msra.mxu0 %v1019
  %1839 = vmatpush.msra.mxu0 %v1017
  %1840 = vmatpush.msra.mxu0 %v1015
  %1841 = vmatpush.msra.mxu0 %v1013
  %1842 = vmatpush.msra.mxu0 %v1011
  %1843 = vmatpush.msra.mxu0 %v1009
  %1844 = vmatpush.msra.mxu0 %v1007
  %1845 = vmatpush.msra.mxu0 %v1005
  %1846 = vmatpush.msra.mxu0 %v1003
  %1847 = vmatpush.msra.mxu0 %v1001
  %1848 = vmatpush.msra.mxu0 %v999
  %1849 = vmatpush.msra.mxu0 %v997
  %1850 = vmatmul.f32.gmra.mxu0 %v855
  %v1851 = vpop.f32.mrf.mxu0
  %v1852 = vadd.f32 %v1781, %v1851
  %1853 = vmatmul.f32.gmra.mxu0 %v856
  %v1854 = vpop.f32.mrf.mxu0
  %v1855 = vadd.f32 %v1784, %v1854
  %1856 = vmatmul.f32.gmra.mxu0 %v857
  %v1857 = vpop.f32.mrf.mxu0
  %v1858 = vadd.f32 %v1787, %v1857
  %1859 = vmatmul.f32.gmra.mxu0 %v858
  %v1860 = vpop.f32.mrf.mxu0
  %v1861 = vadd.f32 %v1790, %v1860
  %1862 = vmatmul.f32.gmra.mxu0 %v859
  %v1863 = vpop.f32.mrf.mxu0
  %v1864 = vadd.f32 %v1793, %v1863
  %1865 = vmatmul.f32.gmra.mxu0 %v860
  %v1866 = vpop.f32.mrf.mxu0
  %v1867 = vadd.f32 %v1796, %v1866
  %1868 = vmatmul.f32.gmra.mxu0 %v861
  %v1869 = vpop.f32.mrf.mxu0
  %v1870 = vadd.f32 %v1799, %v1869
  %1871 = vmatmul.f32.gmra.mxu0 %v862
  %v1872 = vpop.f32.mrf.mxu0
  %v1873 = vadd.f32 %v1802, %v1872
  %1874 = vmatmul.f32.gmra.mxu0 %v863
  %v1875 = vpop.f32.mrf.mxu0
  %v1876 = vadd.f32 %v1805, %v1875
  %1877 = vmatmul.f32.gmra.mxu0 %v864
  %v1878 = vpop.f32.mrf.mxu0
  %v1879 = vadd.f32 %v1808, %v1878
  %1880 = vmatmul.f32.gmra.mxu0 %v865
  %v1881 = vpop.f32.mrf.mxu0
  %v1882 = vadd.f32 %v1811, %v1881
  %1883 = vmatmul.f32.gmra.mxu0 %v866
  %v1884 = vpop.f32.mrf.mxu0
  %v1885 = vadd.f32 %v1814, %v1884
  %1886 = vmatmul.f32.gmra.mxu0 %v867
  %v1887 = vpop.f32.mrf.mxu0
  %v1888 = vadd.f32 %v1817, %v1887
  %1889 = vmatmul.f32.gmra.mxu0 %v868
  %v1890 = vpop.f32.mrf.mxu0
  %v1891 = vadd.f32 %v1820, %v1890
  %1892 = vmatmul.f32.gmra.mxu0 %v869
  %v1893 = vpop.f32.mrf.mxu0
  %v1894 = vadd.f32 %v1823, %v1893
  %1895 = vmatmul.f32.gmra.mxu0 %v873
  %v1896 = vpop.f32.mrf.mxu0
  %v1897 = vadd.f32 %v1826, %v1896
  %1898 = vmatmul.f32.gmra.mxu0 %v874
  %v1899 = vpop.f32.mrf.mxu0
  %v1900 = vadd.f32 %v1829, %v1899
  %1901 = vmatmul.f32.gmra.mxu0 %v875
  %v1902 = vpop.f32.mrf.mxu0
  %v1903 = vadd.f32 %v1832, %v1902
  %1904 = vdwg.mxu0
  %1905 = vmatpush.msra.mxu0 %v1059
  %1906 = vmatpush.msra.mxu0 %v1057
  %1907 = vmatpush.msra.mxu0 %v1055
  %1908 = vmatpush.msra.mxu0 %v1053
  %1909 = vmatpush.msra.mxu0 %v1051
  %1910 = vmatpush.msra.mxu0 %v1049
  %1911 = vmatpush.msra.mxu0 %v1047
  %1912 = vmatpush.msra.mxu0 %v1045
  %1913 = vmatpush.msra.mxu0 %v1043
  %1914 = vmatpush.msra.mxu0 %v1041
  %1915 = vmatpush.msra.mxu0 %v1039
  %1916 = vmatpush.msra.mxu0 %v1037
  %1917 = vmatpush.msra.mxu0 %v1035
  %1918 = vmatpush.msra.mxu0 %v1033
  %1919 = vmatpush.msra.mxu0 %v1031
  %1920 = vmatpush.msra.mxu0 %v1029
  %1921 = vmatmul.f32.gmra.mxu0 %v840
  %v1922 = vpop.f32.mrf.mxu0
  %v1923 = vadd.f32 %v1852, %v1922
  %1924 = vmatmul.f32.gmra.mxu0 %v841
  %v1925 = vpop.f32.mrf.mxu0
  %v1926 = vadd.f32 %v1855, %v1925
  %1927 = vmatmul.f32.gmra.mxu0 %v842
  %v1928 = vpop.f32.mrf.mxu0
  %v1929 = vadd.f32 %v1858, %v1928
  %1930 = vmatmul.f32.gmra.mxu0 %v843
  %v1931 = vpop.f32.mrf.mxu0
  %v1932 = vadd.f32 %v1861, %v1931
  %1933 = vmatmul.f32.gmra.mxu0 %v844
  %v1934 = vpop.f32.mrf.mxu0
  %v1935 = vadd.f32 %v1864, %v1934
  %1936 = vmatmul.f32.gmra.mxu0 %v845
  %v1937 = vpop.f32.mrf.mxu0
  %v1938 = vadd.f32 %v1867, %v1937
  %1939 = vmatmul.f32.gmra.mxu0 %v846
  %v1940 = vpop.f32.mrf.mxu0
  %v1941 = vadd.f32 %v1870, %v1940
  %1942 = vmatmul.f32.gmra.mxu0 %v847
  %v1943 = vpop.f32.mrf.mxu0
  %v1944 = vadd.f32 %v1873, %v1943
  %1945 = vmatmul.f32.gmra.mxu0 %v848
  %v1946 = vpop.f32.mrf.mxu0
  %v1947 = vadd.f32 %v1876, %v1946
  %1948 = vmatmul.f32.gmra.mxu0 %v849
  %v1949 = vpop.f32.mrf.mxu0
  %v1950 = vadd.f32 %v1879, %v1949
  %1951 = vmatmul.f32.gmra.mxu0 %v850
  %v1952 = vpop.f32.mrf.mxu0
  %v1953 = vadd.f32 %v1882, %v1952
  %1954 = vmatmul.f32.gmra.mxu0 %v851
  %v1955 = vpop.f32.mrf.mxu0
  %v1956 = vadd.f32 %v1885, %v1955
  %1957 = vmatmul.f32.gmra.mxu0 %v870
  %v1958 = vpop.f32.mrf.mxu0
  %v1959 = vadd.f32 %v1888, %v1958
  %1960 = vmatmul.f32.gmra.mxu0 %v871
  %v1961 = vpop.f32.mrf.mxu0
  %v1962 = vadd.f32 %v1891, %v1961
  %1963 = vmatmul.f32.gmra.mxu0 %v872
  %v1964 = vpop.f32.mrf.mxu0
  %v1965 = vadd.f32 %v1894, %v1964
  %1966 = vmatmul.f32.gmra.mxu0 %v876
  %v1967 = vpop.f32.mrf.mxu0
  %v1968 = vadd.f32 %v1897, %v1967
  %1969 = vmatmul.f32.gmra.mxu0 %v877
  %v1970 = vpop.f32.mrf.mxu0
  %v1971 = vadd.f32 %v1900, %v1970
  %1972 = vmatmul.f32.gmra.mxu0 %v878
  %v1973 = vpop.f32.mrf.mxu0
  %v1974 = vadd.f32 %v1903, %v1973
  %1975 = vdwg.mxu0
  %1976 = vmatpush.msra.mxu0 %v1091
  %1977 = vmatpush.msra.mxu0 %v1089
  %1978 = vmatpush.msra.mxu0 %v1087
  %1979 = vmatpush.msra.mxu0 %v1085
  %1980 = vmatpush.msra.mxu0 %v1083
  %1981 = vmatpush.msra.mxu0 %v1081
  %1982 = vmatpush.msra.mxu0 %v1079
  %1983 = vmatpush.msra.mxu0 %v1077
  %1984 = vmatpush.msra.mxu0 %v1075
  %1985 = vmatpush.msra.mxu0 %v1073
  %1986 = vmatpush.msra.mxu0 %v1071
  %1987 = vmatpush.msra.mxu0 %v1069
  %1988 = vmatpush.msra.mxu0 %v1067
  %1989 = vmatpush.msra.mxu0 %v1065
  %1990 = vmatpush.msra.mxu0 %v1063
  %1991 = vmatpush.msra.mxu0 %v1061
  %1992 = vmatmul.f32.gmra.mxu0 %v858
  %v1993 = vpop.f32.mrf.mxu0
  %v1994 = vadd.f32 %v1923, %v1993
  %1995 = vmatmul.f32.gmra.mxu0 %v859
  %v1996 = vpop.f32.mrf.mxu0
  %v1997 = vadd.f32 %v1926, %v1996
  %1998 = vmatmul.f32.gmra.mxu0 %v860
  %v1999 = vpop.f32.mrf.mxu0
  %v2000 = vadd.f32 %v1929, %v1999
  %2001 = vmatmul.f32.gmra.mxu0 %v861
  %v2002 = vpop.f32.mrf.mxu0
  %v2003 = vadd.f32 %v1932, %v2002
  %2004 = vmatmul.f32.gmra.mxu0 %v862
  %v2005 = vpop.f32.mrf.mxu0
  %v2006 = vadd.f32 %v1935, %v2005
  %2007 = vmatmul.f32.gmra.mxu0 %v863
  %v2008 = vpop.f32.mrf.mxu0
  %v2009 = vadd.f32 %v1938, %v2008
  %2010 = vmatmul.f32.gmra.mxu0 %v864
  %v2011 = vpop.f32.mrf.mxu0
  %v2012 = vadd.f32 %v1941, %v2011
  %2013 = vmatmul.f32.gmra.mxu0 %v865
  %v2014 = vpop.f32.mrf.mxu0
  %v2015 = vadd.f32 %v1944, %v2014
  %2016 = vmatmul.f32.gmra.mxu0 %v866
  %v2017 = vpop.f32.mrf.mxu0
  %v2018 = vadd.f32 %v1947, %v2017
  %2019 = vmatmul.f32.gmra.mxu0 %v867
  %v2020 = vpop.f32.mrf.mxu0
  %v2021 = vadd.f32 %v1950, %v2020
  %2022 = vmatmul.f32.gmra.mxu0 %v868
  %v2023 = vpop.f32.mrf.mxu0
  %v2024 = vadd.f32 %v1953, %v2023
  %2025 = vmatmul.f32.gmra.mxu0 %v869
  %v2026 = vpop.f32.mrf.mxu0
  %v2027 = vadd.f32 %v1956, %v2026
  %2028 = vmatmul.f32.gmra.mxu0 %v873
  %v2029 = vpop.f32.mrf.mxu0
  %v2030 = vadd.f32 %v1959, %v2029
  %2031 = vmatmul.f32.gmra.mxu0 %v874
  %v2032 = vpop.f32.mrf.mxu0
  %v2033 = vadd.f32 %v1962, %v2032
  %2034 = vmatmul.f32.gmra.mxu0 %v875
  %v2035 = vpop.f32.mrf.mxu0
  %v2036 = vadd.f32 %v1965, %v2035
  %2037 = vmatmul.f32.gmra.mxu0 %v879
  %v2038 = vpop.f32.mrf.mxu0
  %v2039 = vadd.f32 %v1968, %v2038
  %2040 = vmatmul.f32.gmra.mxu0 %v880
  %v2041 = vpop.f32.mrf.mxu0
  %v2042 = vadd.f32 %v1971, %v2041
  %2043 = vmatmul.f32.gmra.mxu0 %v881
  %v2044 = vpop.f32.mrf.mxu0
  %v2045 = vadd.f32 %v1974, %v2044
  %2046 = vdwg.mxu0
  %2047 = vmatpush.msra.mxu0 %v1123
  %2048 = vmatpush.msra.mxu0 %v1121
  %2049 = vmatpush.msra.mxu0 %v1119
  %2050 = vmatpush.msra.mxu0 %v1117
  %2051 = vmatpush.msra.mxu0 %v1115
  %2052 = vmatpush.msra.mxu0 %v1113
  %2053 = vmatpush.msra.mxu0 %v1111
  %2054 = vmatpush.msra.mxu0 %v1109
  %2055 = vmatpush.msra.mxu0 %v1107
  %2056 = vmatpush.msra.mxu0 %v1105
  %2057 = vmatpush.msra.mxu0 %v1103
  %2058 = vmatpush.msra.mxu0 %v1101
  %2059 = vmatpush.msra.mxu0 %v1099
  %2060 = vmatpush.msra.mxu0 %v1097
  %2061 = vmatpush.msra.mxu0 %v1095
  %2062 = vmatpush.msra.mxu0 %v1093
  %2063 = vmatmul.f32.gmra.mxu0 %v882
  %v2064 = vpop.f32.mrf.mxu0
  %v2065 = vadd.f32 %v1994, %v2064
  %2066 = vmatmul.f32.gmra.mxu0 %v883
  %v2067 = vpop.f32.mrf.mxu0
  %v2068 = vadd.f32 %v1997, %v2067
  %2069 = vmatmul.f32.gmra.mxu0 %v884
  %v2070 = vpop.f32.mrf.mxu0
  %v2071 = vadd.f32 %v2000, %v2070
  %2072 = vmatmul.f32.gmra.mxu0 %v885
  %v2073 = vpop.f32.mrf.mxu0
  %v2074 = vadd.f32 %v2003, %v2073
  %2075 = vmatmul.f32.gmra.mxu0 %v886
  %v2076 = vpop.f32.mrf.mxu0
  %v2077 = vadd.f32 %v2006, %v2076
  %2078 = vmatmul.f32.gmra.mxu0 %v887
  %v2079 = vpop.f32.mrf.mxu0
  %v2080 = vadd.f32 %v2009, %v2079
  %2081 = vmatmul.f32.gmra.mxu0 %v888
  %v2082 = vpop.f32.mrf.mxu0
  %v2083 = vadd.f32 %v2012, %v2082
  %2084 = vmatmul.f32.gmra.mxu0 %v889
  %v2085 = vpop.f32.mrf.mxu0
  %v2086 = vadd.f32 %v2015, %v2085
  %2087 = vmatmul.f32.gmra.mxu0 %v890
  %v2088 = vpop.f32.mrf.mxu0
  %v2089 = vadd.f32 %v2018, %v2088
  %2090 = vmatmul.f32.gmra.mxu0 %v891
  %v2091 = vpop.f32.mrf.mxu0
  %v2092 = vadd.f32 %v2021, %v2091
  %2093 = vmatmul.f32.gmra.mxu0 %v892
  %v2094 = vpop.f32.mrf.mxu0
  %v2095 = vadd.f32 %v2024, %v2094
  %2096 = vmatmul.f32.gmra.mxu0 %v893
  %v2097 = vpop.f32.mrf.mxu0
  %v2098 = vadd.f32 %v2027, %v2097
  %2099 = vmatmul.f32.gmra.mxu0 %v894
  %v2100 = vpop.f32.mrf.mxu0
  %v2101 = vadd.f32 %v2030, %v2100
  %2102 = vmatmul.f32.gmra.mxu0 %v895
  %v2103 = vpop.f32.mrf.mxu0
  %v2104 = vadd.f32 %v2033, %v2103
  %2105 = vmatmul.f32.gmra.mxu0 %v896
  %v2106 = vpop.f32.mrf.mxu0
  %v2107 = vadd.f32 %v2036, %v2106
  %2108 = vmatmul.f32.gmra.mxu0 %v897
  %v2109 = vpop.f32.mrf.mxu0
  %v2110 = vadd.f32 %v2039, %v2109
  %2111 = vmatmul.f32.gmra.mxu0 %v898
  %v2112 = vpop.f32.mrf.mxu0
  %v2113 = vadd.f32 %v2042, %v2112
  %2114 = vmatmul.f32.gmra.mxu0 %v899
  %v2115 = vpop.f32.mrf.mxu0
  %v2116 = vadd.f32 %v2045, %v2115
  %2117 = vdwg.mxu0
  %2118 = vxpose.xlu0.b32.start [1/16] %v1568, 128
  %2119 = vxpose.xlu0.b32.cont [2/16] %v1571, 128
  %2120 = vxpose.xlu0.b32.cont [3/16] %v1574, 128
  %2121 = vxpose.xlu0.b32.cont [4/16] %v1577, 128
  %2122 = vxpose.xlu0.b32.cont [5/16] %v1580, 128
  %2123 = vxpose.xlu0.b32.cont [6/16] %v1583, 128
  %2124 = vxpose.xlu0.b32.cont [7/16] %v1586, 128
  %2125 = vxpose.xlu0.b32.cont [8/16] %v1589, 128
  %2126 = vxpose.xlu0.b32.cont [9/16] %v1592, 128
  %2127 = vxpose.xlu0.b32.cont [10/16] %v1595, 128
  %2128 = vxpose.xlu0.b32.cont [11/16] %v1598, 128
  %2129 = vxpose.xlu0.b32.cont [12/16] %v1601, 128
  %2130 = vxpose.xlu0.b32.cont [13/16] %v1604, 128
  %2131 = vxpose.xlu0.b32.cont [14/16] %v1607, 128
  %2132 = vxpose.xlu0.b32.cont [15/16] %v1610, 128
  %2133 = vxpose.xlu0.b32.end [16/16] %v1613, 128
  %v2134 = vpop.trf.xlu0
  %v2135 = vpop.trf.xlu0
  %v2136 = vpop.trf.xlu0
  %v2137 = vpop.trf.xlu0
  %v2138 = vpop.trf.xlu0
  %v2139 = vpop.trf.xlu0
  %v2140 = vpop.trf.xlu0
  %v2141 = vpop.trf.xlu0
  %v2142 = vpop.trf.xlu0
  %v2143 = vpop.trf.xlu0
  %v2144 = vpop.trf.xlu0
  %v2145 = vpop.trf.xlu0
  %v2146 = vpop.trf.xlu0
  %v2147 = vpop.trf.xlu0
  %v2148 = vpop.trf.xlu0
  %v2149 = vpop.trf.xlu0
  %2150 = vxpose.xlu0.b32.start [1/16] %v2065, 128
  %2151 = vxpose.xlu0.b32.cont [2/16] %v2068, 128
  %2152 = vxpose.xlu0.b32.cont [3/16] %v2071, 128
  %2153 = vxpose.xlu0.b32.cont [4/16] %v2074, 128
  %2154 = vxpose.xlu0.b32.cont [5/16] %v2077, 128
  %2155 = vxpose.xlu0.b32.cont [6/16] %v2080, 128
  %2156 = vxpose.xlu0.b32.cont [7/16] %v2083, 128
  %2157 = vxpose.xlu0.b32.cont [8/16] %v2086, 128
  %2158 = vxpose.xlu0.b32.cont [9/16] %v2089, 128
  %2159 = vxpose.xlu0.b32.cont [10/16] %v2092, 128
  %2160 = vxpose.xlu0.b32.cont [11/16] %v2095, 128
  %2161 = vxpose.xlu0.b32.cont [12/16] %v2098, 128
  %2162 = vxpose.xlu0.b32.cont [13/16] %v2101, 128
  %2163 = vxpose.xlu0.b32.cont [14/16] %v2104, 128
  %2164 = vxpose.xlu0.b32.cont [15/16] %v2107, 128
  %2165 = vxpose.xlu0.b32.end [16/16] %v2110, 128
  %v2166 = vpop.trf.xlu0
  %v2167 = vpop.trf.xlu0
  %v2168 = vpop.trf.xlu0
  %v2169 = vpop.trf.xlu0
  %v2170 = vpop.trf.xlu0
  %v2171 = vpop.trf.xlu0
  %v2172 = vpop.trf.xlu0
  %v2173 = vpop.trf.xlu0
  %v2174 = vpop.trf.xlu0
  %v2175 = vpop.trf.xlu0
  %v2176 = vpop.trf.xlu0
  %v2177 = vpop.trf.xlu0
  %v2178 = vpop.trf.xlu0
  %v2179 = vpop.trf.xlu0
  %v2180 = vpop.trf.xlu0
  %v2181 = vpop.trf.xlu0
  %2182 = vxpose.xlu0.b32.start [1/16] %v1616, 128
  %2183 = vxpose.xlu0.b32.cont [2/16] %v1619, 128
  %2184 = vxpose.xlu0.b32.cont [3/16] 0.0, 128
  %2185 = vxpose.xlu0.b32.cont [4/16] 0.0, 128
  %2186 = vxpose.xlu0.b32.cont [5/16] 0.0, 128
  %2187 = vxpose.xlu0.b32.cont [6/16] 0.0, 128
  %2188 = vxpose.xlu0.b32.cont [7/16] 0.0, 128
  %2189 = vxpose.xlu0.b32.cont [8/16] 0.0, 128
  %2190 = vxpose.xlu0.b32.cont [9/16] 0.0, 128
  %2191 = vxpose.xlu0.b32.cont [10/16] 0.0, 128
  %2192 = vxpose.xlu0.b32.cont [11/16] 0.0, 128
  %2193 = vxpose.xlu0.b32.cont [12/16] 0.0, 128
  %2194 = vxpose.xlu0.b32.cont [13/16] 0.0, 128
  %2195 = vxpose.xlu0.b32.cont [14/16] 0.0, 128
  %2196 = vxpose.xlu0.b32.cont [15/16] 0.0, 128
  %2197 = vxpose.xlu0.b32.end [16/16] 0.0, 128
  %v2198 = vpop.trf.xlu0
  %v2199 = vpop.trf.xlu0
  %v2200 = vpop.trf.xlu0
  %v2201 = vpop.trf.xlu0
  %v2202 = vpop.trf.xlu0
  %v2203 = vpop.trf.xlu0
  %v2204 = vpop.trf.xlu0
  %v2205 = vpop.trf.xlu0
  %v2206 = vpop.trf.xlu0
  %v2207 = vpop.trf.xlu0
  %v2208 = vpop.trf.xlu0
  %v2209 = vpop.trf.xlu0
  %v2210 = vpop.trf.xlu0
  %v2211 = vpop.trf.xlu0
  %v2212 = vpop.trf.xlu0
  %v2213 = vpop.trf.xlu0
  %2214 = vxpose.xlu0.b32.start [1/16] %v2113, 128
  %2215 = vxpose.xlu0.b32.cont [2/16] %v2116, 128
  %2216 = vxpose.xlu0.b32.cont [3/16] 0.0, 128
  %2217 = vxpose.xlu0.b32.cont [4/16] 0.0, 128
  %2218 = vxpose.xlu0.b32.cont [5/16] 0.0, 128
  %2219 = vxpose.xlu0.b32.cont [6/16] 0.0, 128
  %2220 = vxpose.xlu0.b32.cont [7/16] 0.0, 128
  %2221 = vxpose.xlu0.b32.cont [8/16] 0.0, 128
  %2222 = vxpose.xlu0.b32.cont [9/16] 0.0, 128
  %2223 = vxpose.xlu0.b32.cont [10/16] 0.0, 128
  %2224 = vxpose.xlu0.b32.cont [11/16] 0.0, 128
  %2225 = vxpose.xlu0.b32.cont [12/16] 0.0, 128
  %2226 = vxpose.xlu0.b32.cont [13/16] 0.0, 128
  %2227 = vxpose.xlu0.b32.cont [14/16] 0.0, 128
  %2228 = vxpose.xlu0.b32.cont [15/16] 0.0, 128
  %2229 = vxpose.xlu0.b32.end [16/16] 0.0, 128
  %v2230 = vpop.trf.xlu0
  %v2231 = vpop.trf.xlu0
  %v2232 = vpop.trf.xlu0
  %v2233 = vpop.trf.xlu0
  %v2234 = vpop.trf.xlu0
  %v2235 = vpop.trf.xlu0
  %v2236 = vpop.trf.xlu0
  %v2237 = vpop.trf.xlu0
  %v2238 = vpop.trf.xlu0
  %v2239 = vpop.trf.xlu0
  %v2240 = vpop.trf.xlu0
  %v2241 = vpop.trf.xlu0
  %v2242 = vpop.trf.xlu0
  %v2243 = vpop.trf.xlu0
  %v2244 = vpop.trf.xlu0
  %v2245 = vpop.trf.xlu0
  %2246 = vst [vmem:[%s3] sm:$0xff] %v2134
  %2247 = vst.msk [vmem:[%s3 + $0x8] sm:$0xff] %vm46, %v2198
  %2248 = vst [vmem:[%s3 + $0x10] sm:$0xff] %v2135
  %2249 = vst.msk [vmem:[%s3 + $0x18] sm:$0xff] %vm46, %v2199
  %2250 = vst [vmem:[%s3 + $0x20] sm:$0xff] %v2136
  %2251 = vst.msk [vmem:[%s3 + $0x28] sm:$0xff] %vm46, %v2200
  %2252 = vst [vmem:[%s3 + $0x30] sm:$0xff] %v2137
  %2253 = vst.msk [vmem:[%s3 + $0x38] sm:$0xff] %vm46, %v2201
  %2254 = vst [vmem:[%s3 + $0x40] sm:$0xff] %v2138
  %2255 = vst.msk [vmem:[%s3 + $0x48] sm:$0xff] %vm46, %v2202
  %2256 = vst [vmem:[%s3 + $0x50] sm:$0xff] %v2139
  %2257 = vst.msk [vmem:[%s3 + $0x58] sm:$0xff] %vm46, %v2203
  %2258 = vst [vmem:[%s3 + $0x60] sm:$0xff] %v2140
  %2259 = vst.msk [vmem:[%s3 + $0x68] sm:$0xff] %vm46, %v2204
  %2260 = vst [vmem:[%s3 + $0x70] sm:$0xff] %v2141
  %2261 = vst.msk [vmem:[%s3 + $0x78] sm:$0xff] %vm46, %v2205
  %2262 = vst [vmem:[%s3 + $0x80] sm:$0xff] %v2142
  %2263 = vst.msk [vmem:[%s3 + $0x88] sm:$0xff] %vm46, %v2206
  %2264 = vst [vmem:[%s3 + $0x90] sm:$0xff] %v2143
  %2265 = vst.msk [vmem:[%s3 + $0x98] sm:$0xff] %vm46, %v2207
  %2266 = vst [vmem:[%s3 + $0xa0] sm:$0xff] %v2144
  %2267 = vst.msk [vmem:[%s3 + $0xa8] sm:$0xff] %vm46, %v2208
  %2268 = vst [vmem:[%s3 + $0xb0] sm:$0xff] %v2145
  %2269 = vst.msk [vmem:[%s3 + $0xb8] sm:$0xff] %vm46, %v2209
  %2270 = vst [vmem:[%s3 + $0xc0] sm:$0xff] %v2146
  %2271 = vst.msk [vmem:[%s3 + $0xc8] sm:$0xff] %vm46, %v2210
  %2272 = vst [vmem:[%s3 + $0xd0] sm:$0xff] %v2147
  %2273 = vst.msk [vmem:[%s3 + $0xd8] sm:$0xff] %vm46, %v2211
  %2274 = vst [vmem:[%s3 + $0xe0] sm:$0xff] %v2148
  %2275 = vst.msk [vmem:[%s3 + $0xe8] sm:$0xff] %vm46, %v2212
  %2276 = vst [vmem:[%s3 + $0xf0] sm:$0xff] %v2149
  %2277 = vst.msk [vmem:[%s3 + $0xf8] sm:$0xff] %vm46, %v2213
  %2278 = vst [vmem:[%s3 + $0x100] sm:$0xff] %v2166
  %2279 = vst.msk [vmem:[%s3 + $0x108] sm:$0xff] %vm46, %v2230
  %2280 = vst [vmem:[%s3 + $0x110] sm:$0xff] %v2167
  %2281 = vst.msk [vmem:[%s3 + $0x118] sm:$0xff] %vm46, %v2231
  %2282 = vst [vmem:[%s3 + $0x120] sm:$0xff] %v2168
  %2283 = vst.msk [vmem:[%s3 + $0x128] sm:$0xff] %vm46, %v2232
  %2284 = vst [vmem:[%s3 + $0x130] sm:$0xff] %v2169
  %2285 = vst.msk [vmem:[%s3 + $0x138] sm:$0xff] %vm46, %v2233
  %2286 = vst [vmem:[%s3 + $0x140] sm:$0xff] %v2170
  %2287 = vst.msk [vmem:[%s3 + $0x148] sm:$0xff] %vm46, %v2234
  %2288 = vst [vmem:[%s3 + $0x150] sm:$0xff] %v2171
  %2289 = vst.msk [vmem:[%s3 + $0x158] sm:$0xff] %vm46, %v2235
  %2290 = vst [vmem:[%s3 + $0x160] sm:$0xff] %v2172
  %2291 = vst.msk [vmem:[%s3 + $0x168] sm:$0xff] %vm46, %v2236
  %2292 = vst [vmem:[%s3 + $0x170] sm:$0xff] %v2173
  %2293 = vst.msk [vmem:[%s3 + $0x178] sm:$0xff] %vm46, %v2237
  // Predicated region
  $region14: #{bn_relu_conv.1} parent=0 // pred_check
    _
  $region15: #{bn_relu_conv.1} parent=0 // pred_check_branch
    %2295 = sbr.rel (0) target = $region17
  $region16: #{bn_relu_conv.1} parent=0 // pred_region
    _
  $region17: #{bn_relu_conv.1} parent=0 // pred_fallthru
    _
  // Predicated region
  $region18: #{bn_relu_conv.1} parent=0 // pred_check
    _
  $region19: #{bn_relu_conv.1} parent=0 // pred_check_branch
    %2297 = sbr.rel (0) target = $region21
  $region20: #{bn_relu_conv.1} parent=0 // pred_region
    _
  $region21: #{bn_relu_conv.1} parent=0 // pred_fallthru
    _

</llo_original>
